<compile_context>
chip_gen: v5e
topology: v5e:2x2
jax: 0.10.0
libtpu: 0.0.40
codegen_flags: <defaults>
</compile_context>

<pallas_src>
import jax
import jax.numpy as jnp
import numpy as np
from jax.experimental import pallas as pl
from jax.experimental.pallas import tpu as pltpu

MAX_PAD = 2   # largest conv padding in the block (the 5-tap conv)


def _round_up(x, m):
    return (x + m - 1) // m * m


def build_kernel(B, L, Cin, pool_features, c_out_pad):
    """Builds the fused InceptionA kernel for static (B, L, Cin, pool)."""
    P = MAX_PAD
    c_out = 64 + 64 + 96 + pool_features
    stem_w = 64 + 48 + 64     # fused 1x1 stem output width (176)

    def kernel(xp_ref,            # (B, Lp, Cin) bf16, zero halos baked in
               ws_ref,            # (Cin, 176)   bf16  fused 1x1 stem weights
               w5b_ref,           # (5*48, 64)   bf16
               w3b_ref,           # (3*64, 96)   bf16
               w3c_ref,           # (3*96, 96)   bf16
               wp_ref,            # (3*Cin, pool) bf16
               bias_ref,          # (8, bias_w)  f32, one conv's beta per row
               out_ref,           # (B, L, c_out_pad)  bf16
               scr_a, scr_b):     # bf16 zero-haloed scratch

        def conv_from(src_ref, ci, w_ref, K):
            # 1-D "same" conv (stride 1) as ONE im2col MXU matmul: lane-concat
            # the K shifted slices -> (B*L, K*ci), contract against (K*ci, Co)
            # with f32 accumulation.
            pad = (K - 1) // 2          # 1-tap:0, 3-tap:1, 5-tap:2
            off = P - pad
            if K == 1:
                slab = src_ref[:, off:off + L, :ci]
            else:
                slab = jnp.concatenate(
                    [src_ref[:, off + k:off + k + L, :ci] for k in range(K)],
                    axis=-1)
            return jnp.dot(slab.reshape(B * L, K * ci), w_ref[...],
                           preferred_element_type=jnp.float32)

        def bn_relu(y, row, co):
            # BN scale is folded into the conv weights on the host; only the
            # shift (beta) remains.  One beta per bias row -> the slice always
            # starts at lane 0 (no lane rotation).
            return jnp.maximum(y + bias_ref[row:row + 1, :co], 0.0)

        def stage(ref, act2d, co):
            # Stage an intermediate activation into scratch, zero halos baked
            # in via jnp.pad (single store).  Every step fully writes what it
            # later reads, so the batch grid axis can safely run "parallel".
            act = act2d.reshape(B, L, co)
            ref[:, :, :co] = jnp.pad(
                act, ((0, 0), (P, P), (0, 0))).astype(ref.dtype)

        # ---- fused 1x1 stem: [branch1x1 | branch5x5.a | branch3x3.a] ----
        stem = bn_relu(conv_from(xp_ref, Cin, ws_ref, 1), 0, stem_w)
        br1 = stem[:, 0:64]                       # branch1x1 result
        stage(scr_a, stem[:, 64:112], 48)         # branch5x5 intermediate
        stage(scr_b, stem[:, 112:176], 64)        # branch3x3 intermediate

        # ---- branch 5x5 : k=5 pad=2, 48 -> 64 ----
        br5 = bn_relu(conv_from(scr_a, 48, w5b_ref, 5), 1, 64)

        # ---- branch 3x3 (double) : k=3 64->96, k=3 96->96 ----
        t = bn_relu(conv_from(scr_b, 64, w3b_ref, 3), 2, 96)
        stage(scr_b, t, 96)
        br3 = bn_relu(conv_from(scr_b, 96, w3c_ref, 3), 3, 96)

        # ---- branch pool : AvgPool1d(k=3,s=1,p=1, count_include_pad) + k=3 conv
        a = xp_ref[:, P - 1:P - 1 + L, :].astype(jnp.float32)
        b = xp_ref[:, P:P + L, :].astype(jnp.float32)
        c = xp_ref[:, P + 1:P + 1 + L, :].astype(jnp.float32)
        pooled = (a + b + c) * (1.0 / 3.0)
        stage(scr_a, pooled.reshape(B * L, Cin), Cin)
        brp = bn_relu(conv_from(scr_a, Cin, wp_ref, 3), 4, pool_features)

        # ---- assemble the full channel concat in vregs, one lane-dense store
        pieces = [br1, br5, br3, brp]
        if c_out_pad > c_out:
            pieces.append(jnp.zeros((B * L, c_out_pad - c_out), jnp.float32))
        slab = jnp.concatenate(pieces, axis=-1)
        out_ref[...] = slab.reshape(B, L, c_out_pad).astype(out_ref.dtype)

    return kernel


def inception_a(x_ncl, params, pool_features, batch_tile=None,
                out_dtype=jnp.bfloat16):
    """Fused InceptionA forward.

    x_ncl : (N, Cin, L) float32 in PyTorch NCL layout.
    params: 7 (weight (K, Cin, Cout) with BN scale folded in, beta (1, Cout))
            tuples in order [1x1->64, 1x1->48, 5->64, 1x1->64, 3->96, 3->96,
            3->pool_features].
    Returns (N, L, 224 + pool_features) channels-last (the torch concat axis
    is the last axis here).
    """
    x = jnp.transpose(x_ncl, (0, 2, 1))               # channels-last
    N, L, Cin = x.shape
    assert L % 8 == 0, "L must be a multiple of 8 (sublane tiling)"

    P = MAX_PAD
    Lp = L + 2 * P
    c_out = 64 + 64 + 96 + pool_features
    c_out_pad = _round_up(c_out, 128)                 # lane-dense output stores
    out_bytes = np.dtype(out_dtype).itemsize

    # Batch tiling: prefer >= 2 grid steps (v7x megacore sharding + DMA/compute
    # overlap); within that pick the biggest tile (most MXU rows per pass) that
    # keeps the per-step blocks within a modest VMEM budget.
    def step_bytes(d):
        return (2 * d * Lp * Cin * 2                      # xp block, dbl-buf
                + 2 * d * L * c_out_pad * out_bytes       # out block, dbl-buf
                + d * Lp * (max(48, Cin) + 96) * 2)       # scratch
    if batch_tile is None:
        divisors = [d for d in range(1, N + 1) if N % d == 0]
        cands = [d for d in divisors
                 if N // d >= 2 and step_bytes(d) <= (16 << 20)]
        if cands:
            batch_tile = max(cands)
        else:
            cands2 = [d for d in divisors if N // d >= 2]
            batch_tile = max(cands2) if cands2 else N
    assert N % batch_tile == 0
    B = batch_tile

    # bf16 activations / weights (MXU-native); f32 accumulation in-kernel.
    xp = jnp.pad(x, ((0, 0), (P, P), (0, 0))).astype(jnp.bfloat16)

    (w1, b1), (w5a, b5a), (w5b, b5b), (w3a, b3a), (w3b, b3b), (w3c, b3c), \
        (wp, bp) = params

    def as2d(w):    # (K, Ci, Co) -> (K*Ci, Co); matches im2col tap-major order
        return w.reshape(-1, w.shape[-1]).astype(jnp.bfloat16)

    # Fused 1x1 stem weight: one matmul produces [branch1x1 | 5x5.a | 3x3.a].
    w_stem = jnp.concatenate([as2d(w1), as2d(w5a), as2d(w3a)], axis=-1)
    weights = [w_stem, as2d(w5b), as2d(w3b), as2d(w3c), as2d(wp)]

    # One beta per row, each starting at lane 0 (row 0 = fused stem beta).
    stem_bias = jnp.concatenate(
        [b1.reshape(-1), b5a.reshape(-1), b3a.reshape(-1)])
    bias_rows = [stem_bias, b5b.reshape(-1), b3b.reshape(-1),
                 b3c.reshape(-1), bp.reshape(-1)]
    bias_w = _round_up(max(int(r.shape[0]) for r in bias_rows), 128)
    bias_all = jnp.zeros((8, bias_w), jnp.float32)
    for i, r in enumerate(bias_rows):
        bias_all = bias_all.at[i, :r.shape[0]].set(r.astype(jnp.float32))

    kernel = build_kernel(B, L, Cin, pool_features, c_out_pad)

    in_specs = [pl.BlockSpec((B, Lp, Cin), lambda n: (n, 0, 0))]
    for w in weights:
        in_specs.append(pl.BlockSpec(w.shape, lambda n: (0, 0)))
    in_specs.append(pl.BlockSpec(bias_all.shape, lambda n: (0, 0)))

    # VMEM budget hint: blocks + resident weights/bias, capped well under the
    # v7x 64 MiB physical limit.
    est = (step_bytes(B)
           + sum(int(w.size) * 2 for w in weights)
           + int(bias_all.size) * 4)
    vmem_limit = int(min(48 << 20, max(32 << 20, 2 * est)))

    grid_spec = pltpu.PrefetchScalarGridSpec(
        num_scalar_prefetch=0,
        grid=(N // B,),
        in_specs=in_specs,
        out_specs=pl.BlockSpec((B, L, c_out_pad), lambda n: (n, 0, 0)),
        scratch_shapes=[
            pltpu.VMEM((B, Lp, max(48, Cin)), jnp.bfloat16),  # 5x5 mid / pooled
            pltpu.VMEM((B, Lp, 96), jnp.bfloat16),            # 3x3 mids
        ],
    )
    out = pl.pallas_call(
        kernel,
        out_shape=jax.ShapeDtypeStruct((N, L, c_out_pad), out_dtype),
        grid_spec=grid_spec,
        compiler_params=pltpu.CompilerParams(
            dimension_semantics=("parallel",),      # batch tiles are independent
            vmem_limit_bytes=vmem_limit),
    )(xp, *weights, bias_all)

    if c_out_pad == c_out:
        return out          # no pad columns -> no post-hoc HBM copy
    # TODO(synk): downstream consumers should ideally take the padded layout;
    # this slice costs one extra HBM copy when c_out is not a multiple of 128.
    return out[:, :, :c_out]


def make_conv_bn_params(key, cin, cout, k):
    kw, kg, kb = jax.random.split(key, 3)
    w = jax.random.normal(kw, (k, cin, cout), jnp.float32) / jnp.sqrt(cin * k)
    gamma = 1.0 + 0.1 * jax.random.normal(kg, (cout,), jnp.float32)
    beta = 0.1 * jax.random.normal(kb, (cout,), jnp.float32)
    eps = 1e-5
    scale = gamma / jnp.sqrt(1.0 + eps)      # eval BN: running_mean=0, var=1
    return (w * scale[None, None, :]).astype(jnp.float32), beta.reshape(1, cout)


def reference_forward(x_ncl, params):
    # Pure-JAX channels-last reference. Inputs/weights are cast through bf16
    # (matching the kernel's MXU input precision); conv math is f32/HIGHEST.
    x = jnp.transpose(x_ncl, (0, 2, 1)).astype(jnp.bfloat16).astype(jnp.float32)

    def conv_bn_relu(a, w, b, pad):
        w = w.astype(jnp.bfloat16).astype(jnp.float32)
        y = jax.lax.conv_general_dilated(
            a, w, window_strides=(1,), padding=[(pad, pad)],
            dimension_numbers=("NWC", "WIO", "NWC"),
            precision=jax.lax.Precision.HIGHEST)
        return jnp.maximum(y + b, 0.0)

    (w1, b1), (w5a, b5a), (w5b, b5b), (w3a, b3a), (w3b, b3b), (w3c, b3c), \
        (wp, bp) = params
    br1 = conv_bn_relu(x, w1, b1, 0)
    br5 = conv_bn_relu(conv_bn_relu(x, w5a, b5a, 0), w5b, b5b, 2)
    br3 = conv_bn_relu(
        conv_bn_relu(conv_bn_relu(x, w3a, b3a, 0), w3b, b3b, 1), w3c, b3c, 1)
    xp1 = jnp.pad(x, ((0, 0), (1, 1), (0, 0)))
    pooled = (xp1[:, :-2] + xp1[:, 1:-1] + xp1[:, 2:]) / 3.0
    brp = conv_bn_relu(pooled, wp, bp, 1)
    return jnp.concatenate([br1, br5, br3, brp], axis=-1)


if __name__ == "__main__":
    key = jax.random.PRNGKey(0)
    N, Cin, L = 2, 16, 64
    pool_features = 32   # -> c_out = 256, a multiple of 128 (lane-dense stores)

    k_x, *k_params = jax.random.split(key, 8)
    x_ncl = jax.random.normal(k_x, (N, Cin, L), jnp.float32)  # PyTorch NCL input

    conv_specs = [
        (Cin, 64, 1),                              # branch1x1
        (Cin, 48, 1), (48, 64, 5),                 # branch5x5
        (Cin, 64, 1), (64, 96, 3), (96, 96, 3),    # branch3x3 (double)
        (Cin, pool_features, 3),                   # branchpool conv
    ]
    params = [make_conv_bn_params(kp, ci, co, kk)
              for kp, (ci, co, kk) in zip(k_params, conv_specs)]

    out = inception_a(x_ncl, params, pool_features)
    out = jax.block_until_ready(out)

    ref = reference_forward(x_ncl, params)
    ref_bf = ref.astype(jnp.bfloat16).astype(jnp.float32)   # kernel emits bf16
    out_f = out.astype(jnp.float32)
    if not bool(jnp.allclose(out_f, ref_bf, atol=3e-2, rtol=3e-2)):
        raise AssertionError(
            "kernel/reference mismatch, max|diff|="
            f"{float(jnp.max(jnp.abs(out_f - ref_bf)))}")

    print("KERNEL_OK")
</pallas_src>

<mosaic_0001>
module attributes {stable_mosaic.version = 11 : i64} {
  func.func @kernel(%arg0: i32, %arg1: memref<1x68x16xbf16, #tpu.memory_space<vmem>>, %arg2: memref<16x176xbf16, #tpu.memory_space<vmem>>, %arg3: memref<240x64xbf16, #tpu.memory_space<vmem>>, %arg4: memref<192x96xbf16, #tpu.memory_space<vmem>>, %arg5: memref<288x96xbf16, #tpu.memory_space<vmem>>, %arg6: memref<48x32xbf16, #tpu.memory_space<vmem>>, %arg7: memref<8x256xf32, #tpu.memory_space<vmem>>, %arg8: memref<1x64x256xbf16, #tpu.memory_space<vmem>>, %arg9: memref<1x68x48xbf16, #tpu.memory_space<vmem>>, %arg10: memref<1x68x96xbf16, #tpu.memory_space<vmem>>) attributes {dimension_semantics = [#tpu.dimension_semantics<parallel>], iteration_bounds = array<i64: 2>, scalar_prefetch = 0 : i64, scratch_operands = 2 : i64, tpu.core_type = #tpu.core_type<tc>, window_params = [{transform_indices = @transform_0, window_bounds = array<i64: 1, 68, 16>}, {pipeline_mode = #tpu.pipeline_mode<synchronous>, transform_indices = @transform_1, window_bounds = array<i64: 16, 176>}, {pipeline_mode = #tpu.pipeline_mode<synchronous>, transform_indices = @transform_2, window_bounds = array<i64: 240, 64>}, {pipeline_mode = #tpu.pipeline_mode<synchronous>, transform_indices = @transform_3, window_bounds = array<i64: 192, 96>}, {pipeline_mode = #tpu.pipeline_mode<synchronous>, transform_indices = @transform_4, window_bounds = array<i64: 288, 96>}, {pipeline_mode = #tpu.pipeline_mode<synchronous>, transform_indices = @transform_5, window_bounds = array<i64: 48, 32>}, {pipeline_mode = #tpu.pipeline_mode<synchronous>, transform_indices = @transform_6, window_bounds = array<i64: 8, 256>}, {transform_indices = @transform_7, window_bounds = array<i64: 1, 64, 256>}]} {
    %c0 = arith.constant 0 : index
    %c2 = arith.constant 2 : index
    %c0_0 = arith.constant 0 : index
    %0 = vector.load %arg1[%c0, %c2, %c0_0] : memref<1x68x16xbf16, #tpu.memory_space<vmem>>, vector<1x64x16xbf16>
    %1 = vector.shape_cast %0 : vector<1x64x16xbf16> to vector<64x16xbf16>
    %c0_1 = arith.constant 0 : index
    %c0_2 = arith.constant 0 : index
    %2 = vector.load %arg2[%c0_1, %c0_2] : memref<16x176xbf16, #tpu.memory_space<vmem>>, vector<16x176xbf16>
    %cst = arith.constant dense<0.000000e+00> : vector<64x176xf32>
    %3 = tpu.matmul %1, %2, %cst {dimension_numbers = #tpu.dot_dimension_numbers<[1], [0], [0], [1], [0, 0, 1, 1], [], []>} : vector<64x16xbf16>, vector<16x176xbf16>, vector<64x176xf32> -> vector<64x176xf32>
    %c0_3 = arith.constant 0 : index
    %c0_4 = arith.constant 0 : index
    %4 = vector.load %arg7[%c0_3, %c0_4] : memref<8x256xf32, #tpu.memory_space<vmem>>, vector<1x176xf32>
    %5 = vector.broadcast %4 : vector<1x176xf32> to vector<64x176xf32>
    %6 = arith.addf %3, %5 : vector<64x176xf32>
    %cst_5 = arith.constant 0.000000e+00 : f32
    %7 = vector.broadcast %cst_5 : f32 to vector<64x176xf32>
    %8 = arith.maximumf %6, %7 : vector<64x176xf32>
    %9 = vector.extract_strided_slice %8 {offsets = [0, 0], sizes = [64, 64], strides = [1, 1]} : vector<64x176xf32> to vector<64x64xf32>
    %10 = vector.extract_strided_slice %8 {offsets = [0, 64], sizes = [64, 48], strides = [1, 1]} : vector<64x176xf32> to vector<64x48xf32>
    %11 = vector.shape_cast %10 : vector<64x48xf32> to vector<1x64x48xf32>
    %c0_i32 = arith.constant 0 : i32
    %12 = arith.sitofp %c0_i32 : i32 to f32
    %13 = vector.broadcast %12 : f32 to vector<1x2x48xf32>
    %14 = tpu.concatenate %13, %11 in 1 : vector<1x2x48xf32>, vector<1x64x48xf32> -> vector<1x66x48xf32>
    %15 = vector.broadcast %12 : f32 to vector<1x2x48xf32>
    %16 = tpu.concatenate %14, %15 in 1 : vector<1x66x48xf32>, vector<1x2x48xf32> -> vector<1x68x48xf32>
    %17 = arith.truncf %16 : vector<1x68x48xf32> to vector<1x68x48xbf16>
    %c0_6 = arith.constant 0 : index
    %c0_7 = arith.constant 0 : index
    %c0_8 = arith.constant 0 : index
    %18 = vector.load %arg9[%c0_6, %c0_7, %c0_8] : memref<1x68x48xbf16, #tpu.memory_space<vmem>>, vector<1x68x48xbf16>
    tpu.vector_store %arg9[%c0_6, %c0_7, %c0_8], %17 {strides = array<i32>} : memref<1x68x48xbf16, #tpu.memory_space<vmem>>, vector<1x68x48xbf16>,
    %19 = vector.extract_strided_slice %8 {offsets = [0, 112], sizes = [64, 64], strides = [1, 1]} : vector<64x176xf32> to vector<64x64xf32>
    %20 = vector.shape_cast %19 : vector<64x64xf32> to vector<1x64x64xf32>
    %c0_i32_9 = arith.constant 0 : i32
    %21 = arith.sitofp %c0_i32_9 : i32 to f32
    %22 = vector.broadcast %21 : f32 to vector<1x2x64xf32>
    %23 = tpu.concatenate %22, %20 in 1 : vector<1x2x64xf32>, vector<1x64x64xf32> -> vector<1x66x64xf32>
    %24 = vector.broadcast %21 : f32 to vector<1x2x64xf32>
    %25 = tpu.concatenate %23, %24 in 1 : vector<1x66x64xf32>, vector<1x2x64xf32> -> vector<1x68x64xf32>
    %26 = arith.truncf %25 : vector<1x68x64xf32> to vector<1x68x64xbf16>
    %c0_10 = arith.constant 0 : index
    %c0_11 = arith.constant 0 : index
    %c0_12 = arith.constant 0 : index
    %27 = vector.load %arg10[%c0_10, %c0_11, %c0_12] : memref<1x68x96xbf16, #tpu.memory_space<vmem>>, vector<1x68x64xbf16>
    tpu.vector_store %arg10[%c0_10, %c0_11, %c0_12], %26 {strides = array<i32>} : memref<1x68x96xbf16, #tpu.memory_space<vmem>>, vector<1x68x64xbf16>,
    %c0_13 = arith.constant 0 : index
    %c0_14 = arith.constant 0 : index
    %c0_15 = arith.constant 0 : index
    %28 = vector.load %arg9[%c0_13, %c0_14, %c0_15] : memref<1x68x48xbf16, #tpu.memory_space<vmem>>, vector<1x64x48xbf16>
    %c0_16 = arith.constant 0 : index
    %c1 = arith.constant 1 : index
    %c0_17 = arith.constant 0 : index
    %29 = vector.load %arg9[%c0_16, %c1, %c0_17] : memref<1x68x48xbf16, #tpu.memory_space<vmem>>, vector<1x64x48xbf16>
    %c0_18 = arith.constant 0 : index
    %c2_19 = arith.constant 2 : index
    %c0_20 = arith.constant 0 : index
    %30 = vector.load %arg9[%c0_18, %c2_19, %c0_20] : memref<1x68x48xbf16, #tpu.memory_space<vmem>>, vector<1x64x48xbf16>
    %c0_21 = arith.constant 0 : index
    %c3 = arith.constant 3 : index
    %c0_22 = arith.constant 0 : index
    %31 = vector.load %arg9[%c0_21, %c3, %c0_22] : memref<1x68x48xbf16, #tpu.memory_space<vmem>>, vector<1x64x48xbf16>
    %c0_23 = arith.constant 0 : index
    %c4 = arith.constant 4 : index
    %c0_24 = arith.constant 0 : index
    %32 = vector.load %arg9[%c0_23, %c4, %c0_24] : memref<1x68x48xbf16, #tpu.memory_space<vmem>>, vector<1x64x48xbf16>
    %33 = tpu.concatenate %28, %29, %30, %31, %32 in 2 : vector<1x64x48xbf16>, vector<1x64x48xbf16>, vector<1x64x48xbf16>, vector<1x64x48xbf16>, vector<1x64x48xbf16> -> vector<1x64x240xbf16>
    %34 = vector.shape_cast %33 : vector<1x64x240xbf16> to vector<64x240xbf16>
    %c0_25 = arith.constant 0 : index
    %c0_26 = arith.constant 0 : index
    %35 = vector.load %arg3[%c0_25, %c0_26] : memref<240x64xbf16, #tpu.memory_space<vmem>>, vector<240x64xbf16>
    %cst_27 = arith.constant dense<0.000000e+00> : vector<64x64xf32>
    %36 = tpu.matmul %34, %35, %cst_27 {dimension_numbers = #tpu.dot_dimension_numbers<[1], [0], [0], [1], [0, 0, 1, 1], [], []>} : vector<64x240xbf16>, vector<240x64xbf16>, vector<64x64xf32> -> vector<64x64xf32>
    %c1_28 = arith.constant 1 : index
    %c0_29 = arith.constant 0 : index
    %37 = vector.load %arg7[%c1_28, %c0_29] : memref<8x256xf32, #tpu.memory_space<vmem>>, vector<1x64xf32>
    %38 = vector.broadcast %37 : vector<1x64xf32> to vector<64x64xf32>
    %39 = arith.addf %36, %38 : vector<64x64xf32>
    %cst_30 = arith.constant 0.000000e+00 : f32
    %40 = vector.broadcast %cst_30 : f32 to vector<64x64xf32>
    %41 = arith.maximumf %39, %40 : vector<64x64xf32>
    %c0_31 = arith.constant 0 : index
    %c1_32 = arith.constant 1 : index
    %c0_33 = arith.constant 0 : index
    %42 = vector.load %arg10[%c0_31, %c1_32, %c0_33] : memref<1x68x96xbf16, #tpu.memory_space<vmem>>, vector<1x64x64xbf16>
    %c0_34 = arith.constant 0 : index
    %c2_35 = arith.constant 2 : index
    %c0_36 = arith.constant 0 : index
    %43 = vector.load %arg10[%c0_34, %c2_35, %c0_36] : memref<1x68x96xbf16, #tpu.memory_space<vmem>>, vector<1x64x64xbf16>
    %c0_37 = arith.constant 0 : index
    %c3_38 = arith.constant 3 : index
    %c0_39 = arith.constant 0 : index
    %44 = vector.load %arg10[%c0_37, %c3_38, %c0_39] : memref<1x68x96xbf16, #tpu.memory_space<vmem>>, vector<1x64x64xbf16>
    %45 = tpu.concatenate %42, %43, %44 in 2 : vector<1x64x64xbf16>, vector<1x64x64xbf16>, vector<1x64x64xbf16> -> vector<1x64x192xbf16>
    %46 = vector.shape_cast %45 : vector<1x64x192xbf16> to vector<64x192xbf16>
    %c0_40 = arith.constant 0 : index
    %c0_41 = arith.constant 0 : index
    %47 = vector.load %arg4[%c0_40, %c0_41] : memref<192x96xbf16, #tpu.memory_space<vmem>>, vector<192x96xbf16>
    %cst_42 = arith.constant dense<0.000000e+00> : vector<64x96xf32>
    %48 = tpu.matmul %46, %47, %cst_42 {dimension_numbers = #tpu.dot_dimension_numbers<[1], [0], [0], [1], [0, 0, 1, 1], [], []>} : vector<64x192xbf16>, vector<192x96xbf16>, vector<64x96xf32> -> vector<64x96xf32>
    %c2_43 = arith.constant 2 : index
    %c0_44 = arith.constant 0 : index
    %49 = vector.load %arg7[%c2_43, %c0_44] : memref<8x256xf32, #tpu.memory_space<vmem>>, vector<1x96xf32>
    %50 = vector.broadcast %49 : vector<1x96xf32> to vector<64x96xf32>
    %51 = arith.addf %48, %50 : vector<64x96xf32>
    %cst_45 = arith.constant 0.000000e+00 : f32
    %52 = vector.broadcast %cst_45 : f32 to vector<64x96xf32>
    %53 = arith.maximumf %51, %52 : vector<64x96xf32>
    %54 = vector.shape_cast %53 : vector<64x96xf32> to vector<1x64x96xf32>
    %c0_i32_46 = arith.constant 0 : i32
    %55 = arith.sitofp %c0_i32_46 : i32 to f32
    %56 = vector.broadcast %55 : f32 to vector<1x2x96xf32>
    %57 = tpu.concatenate %56, %54 in 1 : vector<1x2x96xf32>, vector<1x64x96xf32> -> vector<1x66x96xf32>
    %58 = vector.broadcast %55 : f32 to vector<1x2x96xf32>
    %59 = tpu.concatenate %57, %58 in 1 : vector<1x66x96xf32>, vector<1x2x96xf32> -> vector<1x68x96xf32>
    %60 = arith.truncf %59 : vector<1x68x96xf32> to vector<1x68x96xbf16>
    %c0_47 = arith.constant 0 : index
    %c0_48 = arith.constant 0 : index
    %c0_49 = arith.constant 0 : index
    %61 = vector.load %arg10[%c0_47, %c0_48, %c0_49] : memref<1x68x96xbf16, #tpu.memory_space<vmem>>, vector<1x68x96xbf16>
    tpu.vector_store %arg10[%c0_47, %c0_48, %c0_49], %60 {strides = array<i32>} : memref<1x68x96xbf16, #tpu.memory_space<vmem>>, vector<1x68x96xbf16>,
    %c0_50 = arith.constant 0 : index
    %c1_51 = arith.constant 1 : index
    %c0_52 = arith.constant 0 : index
    %62 = vector.load %arg10[%c0_50, %c1_51, %c0_52] : memref<1x68x96xbf16, #tpu.memory_space<vmem>>, vector<1x64x96xbf16>
    %c0_53 = arith.constant 0 : index
    %c2_54 = arith.constant 2 : index
    %c0_55 = arith.constant 0 : index
    %63 = vector.load %arg10[%c0_53, %c2_54, %c0_55] : memref<1x68x96xbf16, #tpu.memory_space<vmem>>, vector<1x64x96xbf16>
    %c0_56 = arith.constant 0 : index
    %c3_57 = arith.constant 3 : index
    %c0_58 = arith.constant 0 : index
    %64 = vector.load %arg10[%c0_56, %c3_57, %c0_58] : memref<1x68x96xbf16, #tpu.memory_space<vmem>>, vector<1x64x96xbf16>
    %65 = tpu.concatenate %62, %63, %64 in 2 : vector<1x64x96xbf16>, vector<1x64x96xbf16>, vector<1x64x96xbf16> -> vector<1x64x288xbf16>
    %66 = vector.shape_cast %65 : vector<1x64x288xbf16> to vector<64x288xbf16>
    %c0_59 = arith.constant 0 : index
    %c0_60 = arith.constant 0 : index
    %67 = vector.load %arg5[%c0_59, %c0_60] : memref<288x96xbf16, #tpu.memory_space<vmem>>, vector<288x96xbf16>
    %cst_61 = arith.constant dense<0.000000e+00> : vector<64x96xf32>
    %68 = tpu.matmul %66, %67, %cst_61 {dimension_numbers = #tpu.dot_dimension_numbers<[1], [0], [0], [1], [0, 0, 1, 1], [], []>} : vector<64x288xbf16>, vector<288x96xbf16>, vector<64x96xf32> -> vector<64x96xf32>
    %c3_62 = arith.constant 3 : index
    %c0_63 = arith.constant 0 : index
    %69 = vector.load %arg7[%c3_62, %c0_63] : memref<8x256xf32, #tpu.memory_space<vmem>>, vector<1x96xf32>
    %70 = vector.broadcast %69 : vector<1x96xf32> to vector<64x96xf32>
    %71 = arith.addf %68, %70 : vector<64x96xf32>
    %cst_64 = arith.constant 0.000000e+00 : f32
    %72 = vector.broadcast %cst_64 : f32 to vector<64x96xf32>
    %73 = arith.maximumf %71, %72 : vector<64x96xf32>
    %c0_65 = arith.constant 0 : index
    %c1_66 = arith.constant 1 : index
    %c0_67 = arith.constant 0 : index
    %74 = vector.load %arg1[%c0_65, %c1_66, %c0_67] : memref<1x68x16xbf16, #tpu.memory_space<vmem>>, vector<1x64x16xbf16>
    %75 = arith.extf %74 : vector<1x64x16xbf16> to vector<1x64x16xf32>
    %c0_68 = arith.constant 0 : index
    %c2_69 = arith.constant 2 : index
    %c0_70 = arith.constant 0 : index
    %76 = vector.load %arg1[%c0_68, %c2_69, %c0_70] : memref<1x68x16xbf16, #tpu.memory_space<vmem>>, vector<1x64x16xbf16>
    %77 = arith.extf %76 : vector<1x64x16xbf16> to vector<1x64x16xf32>
    %c0_71 = arith.constant 0 : index
    %c3_72 = arith.constant 3 : index
    %c0_73 = arith.constant 0 : index
    %78 = vector.load %arg1[%c0_71, %c3_72, %c0_73] : memref<1x68x16xbf16, #tpu.memory_space<vmem>>, vector<1x64x16xbf16>
    %79 = arith.extf %78 : vector<1x64x16xbf16> to vector<1x64x16xf32>
    %80 = arith.addf %75, %77 : vector<1x64x16xf32>
    %81 = arith.addf %80, %79 : vector<1x64x16xf32>
    %cst_74 = arith.constant 0.333333343 : f32
    %82 = vector.broadcast %cst_74 : f32 to vector<1x64x16xf32>
    %83 = arith.mulf %81, %82 : vector<1x64x16xf32>
    %84 = vector.shape_cast %83 : vector<1x64x16xf32> to vector<64x16xf32>
    %85 = vector.shape_cast %84 : vector<64x16xf32> to vector<1x64x16xf32>
    %c0_i32_75 = arith.constant 0 : i32
    %86 = arith.sitofp %c0_i32_75 : i32 to f32
    %87 = vector.broadcast %86 : f32 to vector<1x2x16xf32>
    %88 = tpu.concatenate %87, %85 in 1 : vector<1x2x16xf32>, vector<1x64x16xf32> -> vector<1x66x16xf32>
    %89 = vector.broadcast %86 : f32 to vector<1x2x16xf32>
    %90 = tpu.concatenate %88, %89 in 1 : vector<1x66x16xf32>, vector<1x2x16xf32> -> vector<1x68x16xf32>
    %91 = arith.truncf %90 : vector<1x68x16xf32> to vector<1x68x16xbf16>
    %c0_76 = arith.constant 0 : index
    %c0_77 = arith.constant 0 : index
    %c0_78 = arith.constant 0 : index
    %92 = vector.load %arg9[%c0_76, %c0_77, %c0_78] : memref<1x68x48xbf16, #tpu.memory_space<vmem>>, vector<1x68x16xbf16>
    tpu.vector_store %arg9[%c0_76, %c0_77, %c0_78], %91 {strides = array<i32>} : memref<1x68x48xbf16, #tpu.memory_space<vmem>>, vector<1x68x16xbf16>,
    %c0_79 = arith.constant 0 : index
    %c1_80 = arith.constant 1 : index
    %c0_81 = arith.constant 0 : index
    %93 = vector.load %arg9[%c0_79, %c1_80, %c0_81] : memref<1x68x48xbf16, #tpu.memory_space<vmem>>, vector<1x64x16xbf16>
    %c0_82 = arith.constant 0 : index
    %c2_83 = arith.constant 2 : index
    %c0_84 = arith.constant 0 : index
    %94 = vector.load %arg9[%c0_82, %c2_83, %c0_84] : memref<1x68x48xbf16, #tpu.memory_space<vmem>>, vector<1x64x16xbf16>
    %c0_85 = arith.constant 0 : index
    %c3_86 = arith.constant 3 : index
    %c0_87 = arith.constant 0 : index
    %95 = vector.load %arg9[%c0_85, %c3_86, %c0_87] : memref<1x68x48xbf16, #tpu.memory_space<vmem>>, vector<1x64x16xbf16>
    %96 = tpu.concatenate %93, %94, %95 in 2 : vector<1x64x16xbf16>, vector<1x64x16xbf16>, vector<1x64x16xbf16> -> vector<1x64x48xbf16>
    %97 = vector.shape_cast %96 : vector<1x64x48xbf16> to vector<64x48xbf16>
    %c0_88 = arith.constant 0 : index
    %c0_89 = arith.constant 0 : index
    %98 = vector.load %arg6[%c0_88, %c0_89] : memref<48x32xbf16, #tpu.memory_space<vmem>>, vector<48x32xbf16>
    %cst_90 = arith.constant dense<0.000000e+00> : vector<64x32xf32>
    %99 = tpu.matmul %97, %98, %cst_90 {dimension_numbers = #tpu.dot_dimension_numbers<[1], [0], [0], [1], [0, 0, 1, 1], [], []>} : vector<64x48xbf16>, vector<48x32xbf16>, vector<64x32xf32> -> vector<64x32xf32>
    %c4_91 = arith.constant 4 : index
    %c0_92 = arith.constant 0 : index
    %100 = vector.load %arg7[%c4_91, %c0_92] : memref<8x256xf32, #tpu.memory_space<vmem>>, vector<1x32xf32>
    %101 = vector.broadcast %100 : vector<1x32xf32> to vector<64x32xf32>
    %102 = arith.addf %99, %101 : vector<64x32xf32>
    %cst_93 = arith.constant 0.000000e+00 : f32
    %103 = vector.broadcast %cst_93 : f32 to vector<64x32xf32>
    %104 = arith.maximumf %102, %103 : vector<64x32xf32>
    %105 = tpu.concatenate %9, %41, %73, %104 in 1 : vector<64x64xf32>, vector<64x64xf32>, vector<64x96xf32>, vector<64x32xf32> -> vector<64x256xf32>
    %106 = vector.shape_cast %105 : vector<64x256xf32> to vector<1x64x256xf32>
    %107 = arith.truncf %106 : vector<1x64x256xf32> to vector<1x64x256xbf16>
    %c0_94 = arith.constant 0 : index
    %c0_95 = arith.constant 0 : index
    %c0_96 = arith.constant 0 : index
    %108 = vector.load %arg8[%c0_94, %c0_95, %c0_96] : memref<1x64x256xbf16, #tpu.memory_space<vmem>>, vector<1x64x256xbf16>
    tpu.vector_store %arg8[%c0_94, %c0_95, %c0_96], %107 {strides = array<i32>} : memref<1x64x256xbf16, #tpu.memory_space<vmem>>, vector<1x64x256xbf16>,
    return
  }
  func.func @transform_0(%arg0: i32) -> (i32, i32, i32) {
    %c0_i32 = arith.constant 0 : i32
    %c0_i32_0 = arith.constant 0 : i32
    %c0_i32_1 = arith.constant 0 : i32
    return %arg0, %c0_i32, %c0_i32_0 : i32, i32, i32
  }
  func.func @transform_1(%arg0: i32) -> (i32, i32) {
    %c0_i32 = arith.constant 0 : i32
    %c0_i32_0 = arith.constant 0 : i32
    %c0_i32_1 = arith.constant 0 : i32
    return %c0_i32, %c0_i32_0 : i32, i32
  }
  func.func @transform_2(%arg0: i32) -> (i32, i32) {
    %c0_i32 = arith.constant 0 : i32
    %c0_i32_0 = arith.constant 0 : i32
    %c0_i32_1 = arith.constant 0 : i32
    return %c0_i32, %c0_i32_0 : i32, i32
  }
  func.func @transform_3(%arg0: i32) -> (i32, i32) {
    %c0_i32 = arith.constant 0 : i32
    %c0_i32_0 = arith.constant 0 : i32
    %c0_i32_1 = arith.constant 0 : i32
    return %c0_i32, %c0_i32_0 : i32, i32
  }
  func.func @transform_4(%arg0: i32) -> (i32, i32) {
    %c0_i32 = arith.constant 0 : i32
    %c0_i32_0 = arith.constant 0 : i32
    %c0_i32_1 = arith.constant 0 : i32
    return %c0_i32, %c0_i32_0 : i32, i32
  }
  func.func @transform_5(%arg0: i32) -> (i32, i32) {
    %c0_i32 = arith.constant 0 : i32
    %c0_i32_0 = arith.constant 0 : i32
    %c0_i32_1 = arith.constant 0 : i32
    return %c0_i32, %c0_i32_0 : i32, i32
  }
  func.func @transform_6(%arg0: i32) -> (i32, i32) {
    %c0_i32 = arith.constant 0 : i32
    %c0_i32_0 = arith.constant 0 : i32
    %c0_i32_1 = arith.constant 0 : i32
    return %c0_i32, %c0_i32_0 : i32, i32
  }
  func.func @transform_7(%arg0: i32) -> (i32, i32, i32) {
    %c0_i32 = arith.constant 0 : i32
    %c0_i32_0 = arith.constant 0 : i32
    %c0_i32_1 = arith.constant 0 : i32
    return %arg0, %c0_i32, %c0_i32_0 : i32, i32, i32
  }
}

</mosaic_0001>

<llo_original>
// kernel: tpu_custom_call.1
$region0: #{tpu_custom_call.1}
  #allocation0 [shape = 'u32[]', space=smem, size = 0x4, offset = 0x4, fixed_abs, tag = 'smem constant byte address 0x4 - core index']
  #allocation1 [shape = 'u32[72,128]{1,0:T(1,128)}', space=vmem, size = 0x9000, scoped, tag = 'internal scratch']
  #allocation2 [shape = 'bf16[1,68,48]{2,1,0:T(8,128)(2,1)}', space=vmem, size = 0x4800, scoped, tag = 'scratch operand']
  #allocation3 [shape = 'bf16[1,68,96]{2,1,0:T(8,128)(2,1)}', space=vmem, size = 0x4800, scoped, tag = 'scratch operand']
  %s0 = inlined_call_operand.vmem [shape: bf16[2,68,16], index: 0, kind: input, shape index: {}]
  %s1 = inlined_call_operand.hbm [shape: bf16[16,176], index: 1, kind: input, shape index: {}]
  %s2 = inlined_call_operand.vmem [shape: bf16[240,64], index: 2, kind: input, shape index: {}]
  %s3 = inlined_call_operand.vmem [shape: bf16[192,96], index: 3, kind: input, shape index: {}]
  %s4 = inlined_call_operand.vmem [shape: bf16[288,96], index: 4, kind: input, shape index: {}]
  %s5 = inlined_call_operand.vmem [shape: bf16[48,32], index: 5, kind: input, shape index: {}]
  %s6 = inlined_call_operand.hbm [shape: f32[8,256], index: 6, kind: input, shape index: {}]
  %s7 = inlined_call_operand.hbm [shape: bf16[2,64,256], index: 7, kind: output, shape index: {}]
  %s8 = sld [smem:[#allocation0]]
  $region69: #{tpu_custom_call.1} parent=0
    _
  %s10 = ssub.s32 1, %s8
  %s11 = scalar_select 0, %s10, %s8
  $region1: #{tpu_custom_call.1} parent=0
    #allocation4 [shape = 'u8[8192]{0}', space=vmem, size = 0x2000, scoped, tag = 'input window, operand 1, single buffered']
    #allocation5 [shape = 's32[2]{0}', space=sflag, size = 0x8, scoped, tag = 'scoped memory for tpu_custom_call.1']
    #allocation6 [shape = 's32[2]{0}', space=sflag, size = 0x8, scoped, tag = 'scoped memory for tpu_custom_call.1']
    #allocation7 [shape = 'u8[8192]{0}', space=vmem, size = 0x2000, scoped, tag = 'input window, operand 6, single buffered']
    #allocation8 [shape = 's32[1]{0}', space=sflag, size = 0x4, scoped, tag = 'scoped memory for tpu_custom_call.1']
    #allocation9 [shape = 'u8[65536]{0}', space=vmem, size = 0x10000, scoped, tag = 'output window, operand 0']
    %12 = vsyncpa [#allocation5], 0
    %13 = vsyncpa [#allocation8], 0
    %14 = vsyncpa [#allocation6], 0
    %s15 = scalar_lea.sflag [#allocation6], 1
    %16 = vsyncpa %s15, 0
    loop: start=0, step=1, limit=4
    $region2: #{tpu_custom_call.1} parent=1 // loop_pre_header
      _
    $region3: #{tpu_custom_call.1} parent=1 // loop_header
      %s18 = sphi 0, %s22
      %p19 = scmp.ge.s32.totalorder %s18, 4
      %s28 = sphi 0, %s30
      %s31 = sphi 0, %s28
      %s32 = sphi 0, %s31
      %s48 = sphi 0, %s32
      %s52 = sphi 0, %s52
      %s54 = sphi 0, %s52
      %s55 = sphi 0, %s54
      %s69 = sphi 0, %s55
      %s73 = sphi 0, %s73
      %s75 = sphi 0, %s73
      %s76 = sphi 0, %s75
      %s90 = sphi 0, %s76
      %s94 = sphi 0, %s94
      %s96 = sphi 0, %s94
      %s97 = sphi 0, %s96
      %s111 = sphi 0, %s97
      %s115 = sphi 0, %s115
      %s117 = sphi 0, %s115
      %s118 = sphi 0, %s117
      %s132 = sphi 0, %s118
      %s136 = sphi 0, %s136
      %s138 = sphi 0, %s136
      %s139 = sphi 0, %s138
      %s153 = sphi 0, %s139
      %s157 = sphi 0, %s157
      %s159 = sphi 0, %s157
      %s160 = sphi 0, %s159
      %s174 = sphi 0, %s160
      %s180 = sphi 0, %s182
      %s183 = sphi 0, %s180
      %s184 = sphi 0, %s183
      %s200 = sphi 0, %s184
    $region4: #{tpu_custom_call.1} parent=1 // loop_header_branch
      %21 = sbr.rel (%p19) target = $region8
    $region5: #{tpu_custom_call.1} parent=1 // loop_body
      %s23 = ssub.s32 %s18, 1
      %s24 = ssub.s32 %s18, 2
      %s25 = sadd.s32 %s18, 1
      %s26 = ssub.s32 %s18, %s25
      %p27 = scmp.eq.s32.totalorder %s26, 0
      %s29 = sadd.s32 %s28, 1
      %s30 = scalar_select %p27, %s28, %s29
      %p33 = pneg %p27
      %p34 = scmp.eq.s32.totalorder %s18, 1
      %p35 = por %p33, %p34
      %p36 = scmp.ne.s32.totalorder %s28, %s31
      %p37 = scmp.eq.s32.totalorder %s18, 0
      %p38 = por %p36, %p37
      %p39 = scmp.ne.s32.totalorder %s28, %s31
      %p40 = scmp.eq.s32.totalorder %s23, 1
      %p41 = por %p39, %p40
      %p42 = scmp.ne.s32.totalorder %s31, %s32
      %p43 = scmp.eq.s32.totalorder %s23, 0
      %p44 = por %p42, %p43
      %p45 = scmp.ne.s32.totalorder %s31, %s32
      %p46 = scmp.eq.s32.totalorder %s24, 1
      %p47 = por %p45, %p46
      %p49 = scmp.ne.s32.totalorder %s32, %s48
      %p50 = scmp.eq.s32.totalorder %s24, 0
      %p51 = por %p49, %p50
      %s53 = sadd.s32 %s52, 1
      %p56 = scmp.eq.s32.totalorder %s18, 1
      %p57 = scmp.ne.s32.totalorder %s52, %s54
      %p58 = scmp.eq.s32.totalorder %s18, 0
      %p59 = por %p57, %p58
      %p60 = scmp.ne.s32.totalorder %s52, %s54
      %p61 = scmp.eq.s32.totalorder %s23, 1
      %p62 = por %p60, %p61
      %p63 = scmp.ne.s32.totalorder %s54, %s55
      %p64 = scmp.eq.s32.totalorder %s23, 0
      %p65 = por %p63, %p64
      %p66 = scmp.ne.s32.totalorder %s54, %s55
      %p67 = scmp.eq.s32.totalorder %s24, 1
      %p68 = por %p66, %p67
      %p70 = scmp.ne.s32.totalorder %s55, %s69
      %p71 = scmp.eq.s32.totalorder %s24, 0
      %p72 = por %p70, %p71
      %s74 = sadd.s32 %s73, 1
      %p77 = scmp.eq.s32.totalorder %s18, 1
      %p78 = scmp.ne.s32.totalorder %s73, %s75
      %p79 = scmp.eq.s32.totalorder %s18, 0
      %p80 = por %p78, %p79
      %p81 = scmp.ne.s32.totalorder %s73, %s75
      %p82 = scmp.eq.s32.totalorder %s23, 1
      %p83 = por %p81, %p82
      %p84 = scmp.ne.s32.totalorder %s75, %s76
      %p85 = scmp.eq.s32.totalorder %s23, 0
      %p86 = por %p84, %p85
      %p87 = scmp.ne.s32.totalorder %s75, %s76
      %p88 = scmp.eq.s32.totalorder %s24, 1
      %p89 = por %p87, %p88
      %p91 = scmp.ne.s32.totalorder %s76, %s90
      %p92 = scmp.eq.s32.totalorder %s24, 0
      %p93 = por %p91, %p92
      %s95 = sadd.s32 %s94, 1
      %p98 = scmp.eq.s32.totalorder %s18, 1
      %p99 = scmp.ne.s32.totalorder %s94, %s96
      %p100 = scmp.eq.s32.totalorder %s18, 0
      %p101 = por %p99, %p100
      %p102 = scmp.ne.s32.totalorder %s94, %s96
      %p103 = scmp.eq.s32.totalorder %s23, 1
      %p104 = por %p102, %p103
      %p105 = scmp.ne.s32.totalorder %s96, %s97
      %p106 = scmp.eq.s32.totalorder %s23, 0
      %p107 = por %p105, %p106
      %p108 = scmp.ne.s32.totalorder %s96, %s97
      %p109 = scmp.eq.s32.totalorder %s24, 1
      %p110 = por %p108, %p109
      %p112 = scmp.ne.s32.totalorder %s97, %s111
      %p113 = scmp.eq.s32.totalorder %s24, 0
      %p114 = por %p112, %p113
      %s116 = sadd.s32 %s115, 1
      %p119 = scmp.eq.s32.totalorder %s18, 1
      %p120 = scmp.ne.s32.totalorder %s115, %s117
      %p121 = scmp.eq.s32.totalorder %s18, 0
      %p122 = por %p120, %p121
      %p123 = scmp.ne.s32.totalorder %s115, %s117
      %p124 = scmp.eq.s32.totalorder %s23, 1
      %p125 = por %p123, %p124
      %p126 = scmp.ne.s32.totalorder %s117, %s118
      %p127 = scmp.eq.s32.totalorder %s23, 0
      %p128 = por %p126, %p127
      %p129 = scmp.ne.s32.totalorder %s117, %s118
      %p130 = scmp.eq.s32.totalorder %s24, 1
      %p131 = por %p129, %p130
      %p133 = scmp.ne.s32.totalorder %s118, %s132
      %p134 = scmp.eq.s32.totalorder %s24, 0
      %p135 = por %p133, %p134
      %s137 = sadd.s32 %s136, 1
      %p140 = scmp.eq.s32.totalorder %s18, 1
      %p141 = scmp.ne.s32.totalorder %s136, %s138
      %p142 = scmp.eq.s32.totalorder %s18, 0
      %p143 = por %p141, %p142
      %p144 = scmp.ne.s32.totalorder %s136, %s138
      %p145 = scmp.eq.s32.totalorder %s23, 1
      %p146 = por %p144, %p145
      %p147 = scmp.ne.s32.totalorder %s138, %s139
      %p148 = scmp.eq.s32.totalorder %s23, 0
      %p149 = por %p147, %p148
      %p150 = scmp.ne.s32.totalorder %s138, %s139
      %p151 = scmp.eq.s32.totalorder %s24, 1
      %p152 = por %p150, %p151
      %p154 = scmp.ne.s32.totalorder %s139, %s153
      %p155 = scmp.eq.s32.totalorder %s24, 0
      %p156 = por %p154, %p155
      %s158 = sadd.s32 %s157, 1
      %p161 = scmp.eq.s32.totalorder %s18, 1
      %p162 = scmp.ne.s32.totalorder %s157, %s159
      %p163 = scmp.eq.s32.totalorder %s18, 0
      %p164 = por %p162, %p163
      %p165 = scmp.ne.s32.totalorder %s157, %s159
      %p166 = scmp.eq.s32.totalorder %s23, 1
      %p167 = por %p165, %p166
      %p168 = scmp.ne.s32.totalorder %s159, %s160
      %p169 = scmp.eq.s32.totalorder %s23, 0
      %p170 = por %p168, %p169
      %p171 = scmp.ne.s32.totalorder %s159, %s160
      %p172 = scmp.eq.s32.totalorder %s24, 1
      %p173 = por %p171, %p172
      %p175 = scmp.ne.s32.totalorder %s160, %s174
      %p176 = scmp.eq.s32.totalorder %s24, 0
      %p177 = por %p175, %p176
      %s178 = ssub.s32 %s18, %s25
      %p179 = scmp.eq.s32.totalorder %s178, 0
      %s181 = sadd.s32 %s180, 1
      %s182 = scalar_select %p179, %s180, %s181
      %p185 = pneg %p179
      %p186 = scmp.eq.s32.totalorder %s18, 1
      %p187 = por %p185, %p186
      %p188 = scmp.ne.s32.totalorder %s180, %s183
      %p189 = scmp.eq.s32.totalorder %s18, 0
      %p190 = por %p188, %p189
      %p191 = scmp.ne.s32.totalorder %s180, %s183
      %p192 = scmp.eq.s32.totalorder %s23, 1
      %p193 = por %p191, %p192
      %p194 = scmp.ne.s32.totalorder %s183, %s184
      %p195 = scmp.eq.s32.totalorder %s23, 0
      %p196 = por %p194, %p195
      %p197 = scmp.ne.s32.totalorder %s183, %s184
      %p198 = scmp.eq.s32.totalorder %s24, 1
      %p199 = por %p197, %p198
      %p201 = scmp.ne.s32.totalorder %s184, %s200
      %p202 = scmp.eq.s32.totalorder %s24, 0
      %p203 = por %p201, %p202
      %p204 = scmp.le.s32.totalorder 1, %s18
      %p205 = scmp.lt.s32.totalorder %s18, 3
      %p206 = pnand %p204, %p205
      %p207 = pneg %p206
      // Predicated region
      $region9: #{tpu_custom_call.1} parent=5 // pred_check
        _
      $region10: #{tpu_custom_call.1} parent=5 // pred_check_branch
        %209 = sbr.rel (%p206) target = $region12
      $region11: #{tpu_custom_call.1} parent=5 // pred_region
        %s210 = ssub.s32 %s18, 1
        // Predicated region
        $region13: #{tpu_custom_call.1} parent=11 // pred_check
          %p211 = pneg %p65
        $region14: #{tpu_custom_call.1} parent=11 // pred_check_branch
          %213 = sbr.rel (%p211) target = $region16
        $region15: #{tpu_custom_call.1} parent=11 // pred_region
          %215 = vsyncadd [#allocation5], 0
          %s216 = sshll.u32 %s1, 4
          %s217 = int_to_ptr.hbm [resolvable:$true] %s216
          %s218 = sshll.u32 [#allocation4], 4
          %s219 = int_to_ptr.vmem [resolvable:$true] %s218
          %224 = dma.hbm_to_vmem [thread:$0]  %s217, 256, %s219, [#allocation5], 128, 128, 8
        $region16: #{tpu_custom_call.1} parent=11 // pred_fallthru
          _
        // Predicated region
        $region17: #{tpu_custom_call.1} parent=11 // pred_check
          %p225 = pneg %p86
        $region18: #{tpu_custom_call.1} parent=11 // pred_check_branch
          %227 = sbr.rel (%p225) target = $region20
        $region19: #{tpu_custom_call.1} parent=11 // pred_region
          _
        $region20: #{tpu_custom_call.1} parent=11 // pred_fallthru
          _
        // Predicated region
        $region21: #{tpu_custom_call.1} parent=11 // pred_check
          %p228 = pneg %p107
        $region22: #{tpu_custom_call.1} parent=11 // pred_check_branch
          %230 = sbr.rel (%p228) target = $region24
        $region23: #{tpu_custom_call.1} parent=11 // pred_region
          _
        $region24: #{tpu_custom_call.1} parent=11 // pred_fallthru
          _
        // Predicated region
        $region25: #{tpu_custom_call.1} parent=11 // pred_check
          %p231 = pneg %p128
        $region26: #{tpu_custom_call.1} parent=11 // pred_check_branch
          %233 = sbr.rel (%p231) target = $region28
        $region27: #{tpu_custom_call.1} parent=11 // pred_region
          _
        $region28: #{tpu_custom_call.1} parent=11 // pred_fallthru
          _
        // Predicated region
        $region29: #{tpu_custom_call.1} parent=11 // pred_check
          %p234 = pneg %p149
        $region30: #{tpu_custom_call.1} parent=11 // pred_check_branch
          %236 = sbr.rel (%p234) target = $region32
        $region31: #{tpu_custom_call.1} parent=11 // pred_region
          _
        $region32: #{tpu_custom_call.1} parent=11 // pred_fallthru
          _
        // Predicated region
        $region33: #{tpu_custom_call.1} parent=11 // pred_check
          %p237 = pneg %p170
        $region34: #{tpu_custom_call.1} parent=11 // pred_check_branch
          %239 = sbr.rel (%p237) target = $region36
        $region35: #{tpu_custom_call.1} parent=11 // pred_region
          %241 = vsyncadd [#allocation8], 0
          %s243 = sshll.u32 %s6, 4
          %s244 = int_to_ptr.hbm [resolvable:$true] %s243
          %s245 = sshll.u32 [#allocation7], 4
          %s246 = int_to_ptr.vmem [resolvable:$true] %s245
          %248 = dma.hbm_to_vmem [thread:$0]  %s244, 256, %s246, [#allocation8]
        $region36: #{tpu_custom_call.1} parent=11 // pred_fallthru
          _
      $region12: #{tpu_custom_call.1} parent=5 // pred_fallthru
        _
      %p249 = scmp.lt.s32.totalorder %s18, 2
      // Predicated region
      $region37: #{tpu_custom_call.1} parent=5 // pred_check
        %p250 = pneg %p249
      $region38: #{tpu_custom_call.1} parent=5 // pred_check_branch
        %252 = sbr.rel (%p250) target = $region40
      $region39: #{tpu_custom_call.1} parent=5 // pred_region
        // Predicated region
        $region41: #{tpu_custom_call.1} parent=39 // pred_check
          %p253 = pneg %p38
        $region42: #{tpu_custom_call.1} parent=39 // pred_check_branch
          %255 = sbr.rel (%p253) target = $region44
        $region43: #{tpu_custom_call.1} parent=39 // pred_region
          %p256 = scmp.lt.s32.totalorder %s18, 1
          %s257 = scalar_select %p256, %s18, 1
          %s258 = smul.addr %s257, 9
          %s259 = smul.addr %s258, 4
          %s260 = scalar_lea.vmem %s0, %s259
        $region44: #{tpu_custom_call.1} parent=39 // pred_fallthru
          _
      $region40: #{tpu_custom_call.1} parent=5 // pred_fallthru
        _
      %p261 = scmp.le.s32.totalorder 1, %s18
      %p262 = scmp.lt.s32.totalorder %s18, 3
      %p263 = pnand %p261, %p262
      %p264 = pneg %p263
      // Predicated region
      $region45: #{tpu_custom_call.1} parent=5 // pred_check
        _
      $region46: #{tpu_custom_call.1} parent=5 // pred_check_branch
        %266 = sbr.rel (%p263) target = $region48
      $region47: #{tpu_custom_call.1} parent=5 // pred_region
        %s267 = ssub.s32 %s18, 1
        // Predicated region
        $region49: #{tpu_custom_call.1} parent=47 // pred_check
          %p268 = pneg %p65
        $region50: #{tpu_custom_call.1} parent=47 // pred_check_branch
          %270 = sbr.rel (%p268) target = $region52
        $region51: #{tpu_custom_call.1} parent=47 // pred_region
          %272 = dma.done [#allocation5], 256
        $region52: #{tpu_custom_call.1} parent=47 // pred_fallthru
          _
        // Predicated region
        $region53: #{tpu_custom_call.1} parent=47 // pred_check
          %p273 = pneg %p170
        $region54: #{tpu_custom_call.1} parent=47 // pred_check_branch
          %275 = sbr.rel (%p273) target = $region56
        $region55: #{tpu_custom_call.1} parent=47 // pred_region
          %277 = dma.done [#allocation8], 256
        $region56: #{tpu_custom_call.1} parent=47 // pred_fallthru
          _
        %p278 = scmp.lt.s32.totalorder %s23, 1
        %s279 = scalar_select %p278, %s23, 1
        %s280 = smul.addr %s279, 9
        %s281 = smul.addr %s280, 4
        %s282 = scalar_lea.vmem %s0, %s281
        %p283 = pneg %p44
        %p284 = pneg %p41
        %p285 = pneg %p65
        %p286 = pneg %p62
        %p287 = pneg %p86
        %p288 = pneg %p83
        %p289 = pneg %p107
        %p290 = pneg %p104
        %p291 = pneg %p128
        %p292 = pneg %p125
        %p293 = pneg %p149
        %p294 = pneg %p146
        %p295 = pneg %p170
        %p296 = pneg %p167
        %p297 = pneg %p196
        %p298 = pneg %p193
        %s299 = sand.u32 %s183, 1
        %s300 = scalar_lea.sflag [#allocation6], %s299
        %s301 = sand.u32 %s183, 1
        %s302 = smul.addr %s301, 64
        %s303 = scalar_lea.vmem [#allocation9], %s302
        %p304 = scmp.lt.s32.totalorder %s23, 1
        %s305 = scalar_select %p304, %s23, 1
        %s306 = smul.addr %s305, 9
        %s307 = smul.addr %s306, 4
        %s308 = scalar_lea.vmem %s0, %s307
        %v310 = vld [vmem:[%s308] sm:$0xe]
        %v311 = vld [vmem:[%s308 + $0x4] sm:$0xf]
        %v312 = vld [vmem:[%s308 + $0x8] sm:$0xf]
        %v313 = vld [vmem:[%s308 + $0xc] sm:$0xf]
        %v314 = vld [vmem:[%s308 + $0x10] sm:$0xf]
        %v315 = vld [vmem:[%s308 + $0x14] sm:$0xf]
        %v316 = vld [vmem:[%s308 + $0x18] sm:$0xf]
        %v317 = vld [vmem:[%s308 + $0x1c] sm:$0xf]
        %v318 = vld [vmem:[%s308 + $0x20] sm:$0x1]
        %v319 = vld [vmem:[#allocation4] sm:$0xff]
        %v320 = vld [vmem:[#allocation4 + $0x8] sm:$0xff]
        %v321 = vld [vmem:[#allocation7] ss:$8 sm:$0x3]
        %v323 = vperm.slane %v321, 0
        %v324 = vperm.slane %v321, 1
        %v336 = vunpack.c.l.b16 %v310
        %v337 = vunpack.c.l.b16 %v311
        %v338 = vunpack.c.l.b16 %v312
        %v339 = vunpack.c.l.b16 %v313
        %v340 = vunpack.c.l.b16 %v314
        %v341 = vunpack.c.l.b16 %v315
        %v342 = vunpack.c.l.b16 %v316
        %v343 = vunpack.c.l.b16 %v317
        %v344 = vunpack.c.l.b16 %v318
        %v345 = vpack.c.b16 %v337, %v336
        %v346 = vpack.c.b16 %v339, %v338
        %v347 = vpack.c.b16 %v341, %v340
        %v348 = vpack.c.b16 %v343, %v342
        %v349 = vpack.c.b16 %v344, %v344
        %vm350 = vcmask 1046528
        %v351 = vrot.slane %v345, 1
        %v352 = vrot.slane %v346, 1
        %v353 = vsel %vm350, %v351, %v352
        %v354 = vrot.slane %v347, 1
        %v355 = vsel %vm350, %v352, %v354
        %v356 = vrot.slane %v348, 1
        %v357 = vsel %vm350, %v354, %v356
        %v358 = vrot.slane %v349, 1
        %v359 = vsel %vm350, %v356, %v358
        %v362 = vunpack.c.l.b16 %v319
        %v363 = vunpack.c.h.b16 %v319
        %v364 = vunpack.c.l.b16 %v320
        %v365 = vunpack.c.h.b16 %v320
        %v366 = vpack.c.b16 %v364, %v362
        %v367 = vpack.c.b16 %v365, %v363
        %vm370 = vcmask 130048
        %v372 = vsel %vm370, %v353, 0
        %v375 = vsel %vm370, %v355, 0
        %v378 = vsel %vm370, %v357, 0
        %v381 = vsel %vm370, %v359, 0
        %383 = vmatpush.bf16.msra.mxu0 0
        %384 = vmatpush.bf16.msra.mxu0 0
        %385 = vmatpush.bf16.msra.mxu0 0
        %386 = vmatpush.bf16.msra.mxu0 0
        %387 = vmatpush.bf16.msra.mxu0 0
        %388 = vmatpush.bf16.msra.mxu0 0
        %389 = vmatpush.bf16.msra.mxu0 0
        %390 = vmatpush.bf16.msra.mxu0 %v366
        %391 = vmatmul.bf16.gmra.mxu0 %v372
        %v392 = vpop.f32.mrf.mxu0
        %v393 = vadd.f32 %v323, %v392
        %v394 = vpop.f32.mrf.mxu0
        %v395 = vadd.f32 %v323, %v394
        %396 = vmatmul.bf16.gmra.mxu0 %v375
        %v397 = vpop.f32.mrf.mxu0
        %v398 = vadd.f32 %v323, %v397
        %v399 = vpop.f32.mrf.mxu0
        %v400 = vadd.f32 %v323, %v399
        %401 = vmatmul.bf16.gmra.mxu0 %v378
        %v402 = vpop.f32.mrf.mxu0
        %v403 = vadd.f32 %v323, %v402
        %v404 = vpop.f32.mrf.mxu0
        %v405 = vadd.f32 %v323, %v404
        %406 = vmatmul.bf16.gmra.mxu0 %v381
        %v407 = vpop.f32.mrf.mxu0
        %v408 = vadd.f32 %v323, %v407
        %v409 = vpop.f32.mrf.mxu0
        %v410 = vadd.f32 %v323, %v409
        %411 = vdwg.mxu0
        %412 = vmatpush.bf16.msra.mxu0 0
        %413 = vmatpush.bf16.msra.mxu0 0
        %414 = vmatpush.bf16.msra.mxu0 0
        %415 = vmatpush.bf16.msra.mxu0 0
        %416 = vmatpush.bf16.msra.mxu0 0
        %417 = vmatpush.bf16.msra.mxu0 0
        %418 = vmatpush.bf16.msra.mxu0 0
        %419 = vmatpush.bf16.msra.mxu0 %v367
        %420 = vmatmul.bf16.gmra.mxu0 %v372
        %v421 = vpop.f32.mrf.mxu0
        %v422 = vadd.f32 %v324, %v421
        %v423 = vpop.f32.mrf.mxu0
        %v424 = vadd.f32 %v324, %v423
        %425 = vmatmul.bf16.gmra.mxu0 %v375
        %v426 = vpop.f32.mrf.mxu0
        %v427 = vadd.f32 %v324, %v426
        %v428 = vpop.f32.mrf.mxu0
        %v429 = vadd.f32 %v324, %v428
        %430 = vmatmul.bf16.gmra.mxu0 %v378
        %v431 = vpop.f32.mrf.mxu0
        %v432 = vadd.f32 %v324, %v431
        %v433 = vpop.f32.mrf.mxu0
        %v434 = vadd.f32 %v324, %v433
        %435 = vmatmul.bf16.gmra.mxu0 %v381
        %v436 = vpop.f32.mrf.mxu0
        %v437 = vadd.f32 %v324, %v436
        %v438 = vpop.f32.mrf.mxu0
        %v439 = vadd.f32 %v324, %v438
        %440 = vdwg.mxu0
        %v441 = vmax.f32 %v393, 0.0
        %v442 = vmax.f32 %v422, 0.0
        %v443 = vmax.f32 %v395, 0.0
        %v444 = vmax.f32 %v424, 0.0
        %v445 = vmax.f32 %v398, 0.0
        %v446 = vmax.f32 %v427, 0.0
        %v447 = vmax.f32 %v400, 0.0
        %v448 = vmax.f32 %v429, 0.0
        %v449 = vmax.f32 %v403, 0.0
        %v450 = vmax.f32 %v432, 0.0
        %v451 = vmax.f32 %v405, 0.0
        %v452 = vmax.f32 %v434, 0.0
        %v453 = vmax.f32 %v408, 0.0
        %v454 = vmax.f32 %v437, 0.0
        %v455 = vmax.f32 %v410, 0.0
        %v456 = vmax.f32 %v439, 0.0
        %vm465 = vcmask 1041408
        %v466 = vrot.slane %v441, 6
        %v467 = vrot.slane %v443, 6
        %v468 = vsel %vm465, %v466, %v467
        %v469 = vrot.slane %v445, 6
        %v470 = vsel %vm465, %v467, %v469
        %v471 = vrot.slane %v447, 6
        %v472 = vsel %vm465, %v469, %v471
        %v473 = vrot.slane %v449, 6
        %v474 = vsel %vm465, %v471, %v473
        %v475 = vrot.slane %v451, 6
        %v476 = vsel %vm465, %v473, %v475
        %v477 = vrot.slane %v453, 6
        %v478 = vsel %vm465, %v475, %v477
        %v479 = vrot.slane %v455, 6
        %v480 = vsel %vm465, %v477, %v479
        %481 = vrot.lane.b32.xlu0 %v466, 64
        %v482 = vpop.permute.xlu0 %481
        %483 = vrot.lane.b32.xlu0 %v468, 64
        %v484 = vpop.permute.xlu0 %483
        %485 = vrot.lane.b32.xlu0 %v470, 64
        %v486 = vpop.permute.xlu0 %485
        %487 = vrot.lane.b32.xlu0 %v472, 64
        %v488 = vpop.permute.xlu0 %487
        %489 = vrot.lane.b32.xlu0 %v474, 64
        %v490 = vpop.permute.xlu0 %489
        %491 = vrot.lane.b32.xlu0 %v476, 64
        %v492 = vpop.permute.xlu0 %491
        %493 = vrot.lane.b32.xlu0 %v478, 64
        %v494 = vpop.permute.xlu0 %493
        %495 = vrot.lane.b32.xlu0 %v480, 64
        %v496 = vpop.permute.xlu0 %495
        %497 = vrot.lane.b32.xlu0 %v479, 64
        %v498 = vpop.permute.xlu0 %497
        %v508 = vsel %vm465, 0.0, %v482
        %v509 = vsel %vm465, %v498, 0.0
        %v510 = vpack.c.bf16 %v508, %v508
        %v511 = vpack.c.bf16 %v484, %v484
        %v512 = vpack.c.bf16 %v486, %v486
        %v513 = vpack.c.bf16 %v488, %v488
        %v514 = vpack.c.bf16 %v490, %v490
        %v515 = vpack.c.bf16 %v492, %v492
        %v516 = vpack.c.bf16 %v494, %v494
        %v517 = vpack.c.bf16 %v496, %v496
        %v518 = vpack.c.bf16 %v509, %v509
        %vm519 = vcmask 388096
        %520 = vst.msk [vmem:[#allocation2] sm:$0xf] %vm519, %v510
        %521 = vst.msk [vmem:[#allocation2 + $0x4] sm:$0xf] %vm519, %v511
        %522 = vst.msk [vmem:[#allocation2 + $0x8] sm:$0xf] %vm519, %v512
        %523 = vst.msk [vmem:[#allocation2 + $0xc] sm:$0xf] %vm519, %v513
        %524 = vst.msk [vmem:[#allocation2 + $0x10] sm:$0xf] %vm519, %v514
        %525 = vst.msk [vmem:[#allocation2 + $0x14] sm:$0xf] %vm519, %v515
        %526 = vst.msk [vmem:[#allocation2 + $0x18] sm:$0xf] %vm519, %v516
        %527 = vst.msk [vmem:[#allocation2 + $0x1c] sm:$0xf] %vm519, %v517
        %vm528 = vcmask 386048
        %529 = vst.msk [vmem:[#allocation2 + $0x20] sm:$0x3] %vm528, %v518
        %v538 = vrot.slane %v442, 6
        %v539 = vrot.slane %v444, 6
        %v540 = vsel %vm465, %v538, %v539
        %v541 = vrot.slane %v446, 6
        %v542 = vsel %vm465, %v539, %v541
        %v543 = vrot.slane %v448, 6
        %v544 = vsel %vm465, %v541, %v543
        %v545 = vrot.slane %v450, 6
        %v546 = vsel %vm465, %v543, %v545
        %v547 = vrot.slane %v452, 6
        %v548 = vsel %vm465, %v545, %v547
        %v549 = vrot.slane %v454, 6
        %v550 = vsel %vm465, %v547, %v549
        %v551 = vrot.slane %v456, 6
        %v552 = vsel %vm465, %v549, %v551
        %553 = vrot.lane.b32.xlu0 %v466, 16
        %v554 = vpop.permute.xlu0 %553
        %555 = vrot.lane.b32.xlu0 %v538, 16
        %v556 = vpop.permute.xlu0 %555
        %557 = vrot.lane.b32.xlu0 %v468, 16
        %v558 = vpop.permute.xlu0 %557
        %559 = vrot.lane.b32.xlu0 %v540, 16
        %v560 = vpop.permute.xlu0 %559
        %561 = vrot.lane.b32.xlu0 %v470, 16
        %v562 = vpop.permute.xlu0 %561
        %563 = vrot.lane.b32.xlu0 %v542, 16
        %v564 = vpop.permute.xlu0 %563
        %565 = vrot.lane.b32.xlu0 %v472, 16
        %v566 = vpop.permute.xlu0 %565
        %567 = vrot.lane.b32.xlu0 %v544, 16
        %v568 = vpop.permute.xlu0 %567
        %569 = vrot.lane.b32.xlu0 %v474, 16
        %v570 = vpop.permute.xlu0 %569
        %571 = vrot.lane.b32.xlu0 %v546, 16
        %v572 = vpop.permute.xlu0 %571
        %573 = vrot.lane.b32.xlu0 %v476, 16
        %v574 = vpop.permute.xlu0 %573
        %575 = vrot.lane.b32.xlu0 %v548, 16
        %v576 = vpop.permute.xlu0 %575
        %577 = vrot.lane.b32.xlu0 %v478, 16
        %v578 = vpop.permute.xlu0 %577
        %579 = vrot.lane.b32.xlu0 %v550, 16
        %v580 = vpop.permute.xlu0 %579
        %581 = vrot.lane.b32.xlu0 %v480, 16
        %v582 = vpop.permute.xlu0 %581
        %583 = vrot.lane.b32.xlu0 %v552, 16
        %v584 = vpop.permute.xlu0 %583
        %585 = vrot.lane.b32.xlu0 %v479, 16
        %v586 = vpop.permute.xlu0 %585
        %587 = vrot.lane.b32.xlu0 %v551, 16
        %v588 = vpop.permute.xlu0 %587
        %v589 = vsel %vm370, %v554, %v556
        %v590 = vsel %vm370, %v558, %v560
        %v591 = vsel %vm370, %v562, %v564
        %v592 = vsel %vm370, %v566, %v568
        %v593 = vsel %vm370, %v570, %v572
        %v594 = vsel %vm370, %v574, %v576
        %v595 = vsel %vm370, %v578, %v580
        %v596 = vsel %vm370, %v582, %v584
        %v597 = vsel %vm370, %v586, %v588
        %v607 = vsel %vm465, 0.0, %v589
        %v608 = vsel %vm465, %v597, 0.0
        %v609 = vpack.c.bf16 %v607, %v607
        %v610 = vpack.c.bf16 %v590, %v590
        %v611 = vpack.c.bf16 %v591, %v591
        %v612 = vpack.c.bf16 %v592, %v592
        %v613 = vpack.c.bf16 %v593, %v593
        %v614 = vpack.c.bf16 %v594, %v594
        %v615 = vpack.c.bf16 %v595, %v595
        %v616 = vpack.c.bf16 %v596, %v596
        %v617 = vpack.c.bf16 %v608, %v608
        %vm618 = vcmask 519168
        %619 = vst.msk [vmem:[#allocation3] sm:$0xf] %vm618, %v609
        %620 = vst.msk [vmem:[#allocation3 + $0x4] sm:$0xf] %vm618, %v610
        %621 = vst.msk [vmem:[#allocation3 + $0x8] sm:$0xf] %vm618, %v611
        %622 = vst.msk [vmem:[#allocation3 + $0xc] sm:$0xf] %vm618, %v612
        %623 = vst.msk [vmem:[#allocation3 + $0x10] sm:$0xf] %vm618, %v613
        %624 = vst.msk [vmem:[#allocation3 + $0x14] sm:$0xf] %vm618, %v614
        %625 = vst.msk [vmem:[#allocation3 + $0x18] sm:$0xf] %vm618, %v615
        %626 = vst.msk [vmem:[#allocation3 + $0x1c] sm:$0xf] %vm618, %v616
        %vm627 = vcmask 517120
        %628 = vst.msk [vmem:[#allocation3 + $0x20] sm:$0x3] %vm627, %v617
        %v629 = vld [vmem:[#allocation2] sm:$0xf]
        %v630 = vld [vmem:[#allocation2 + $0x4] sm:$0xf]
        %v631 = vld [vmem:[#allocation2 + $0x8] sm:$0xf]
        %v632 = vld [vmem:[#allocation2 + $0xc] sm:$0xf]
        %v633 = vld [vmem:[#allocation2 + $0x10] sm:$0xf]
        %v634 = vld [vmem:[#allocation2 + $0x14] sm:$0xf]
        %v635 = vld [vmem:[#allocation2 + $0x18] sm:$0xf]
        %v636 = vld [vmem:[#allocation2 + $0x1c] sm:$0xf]
        %v637 = vld [vmem:[#allocation2 + $0x20] sm:$0x1]
        %v638 = vld [vmem:[#allocation2] sm:$0xe]
        %v639 = vld [vmem:[#allocation2 + $0x20] sm:$0x3]
        %v640 = vld [vmem:[#allocation2] sm:$0xc]
        %v649 = vunpack.c.l.b16 %v629
        %v650 = vunpack.c.l.b16 %v630
        %v651 = vunpack.c.l.b16 %v631
        %v652 = vunpack.c.l.b16 %v632
        %v653 = vunpack.c.l.b16 %v633
        %v654 = vunpack.c.l.b16 %v634
        %v655 = vunpack.c.l.b16 %v635
        %v656 = vunpack.c.l.b16 %v636
        %v657 = vpack.c.b16 %v650, %v649
        %v658 = vpack.c.b16 %v652, %v651
        %v659 = vpack.c.b16 %v654, %v653
        %v660 = vpack.c.b16 %v656, %v655
        %v662 = vunpack.c.l.b16 %v637
        %v663 = vpack.c.b16 %v662, %v662
        %vm664 = vsmask.f32 7424
        %v666 = vshrl.u32 %v657, 16
        %v668 = vshll.u32 %v657, 16
        %v670 = vrot.slane %v668, 1
        %v671 = vor.u32 %v666, %v670
        %v673 = vshll.u32 %v658, 16
        %v675 = vrot.slane %v673, 1
        %v676 = vsel %vm664, %v671, %v675
        %v677 = vshrl.u32 %v658, 16
        %v679 = vor.u32 %v677, %v675
        %v681 = vshll.u32 %v659, 16
        %v683 = vrot.slane %v681, 1
        %v684 = vsel %vm664, %v679, %v683
        %v685 = vshrl.u32 %v659, 16
        %v687 = vor.u32 %v685, %v683
        %v689 = vshll.u32 %v660, 16
        %v691 = vrot.slane %v689, 1
        %v692 = vsel %vm664, %v687, %v691
        %v693 = vshrl.u32 %v660, 16
        %v695 = vor.u32 %v693, %v691
        %v697 = vshll.u32 %v663, 16
        %v699 = vrot.slane %v697, 1
        %v700 = vsel %vm664, %v695, %v699
        %701 = vrot.lane.b32.xlu0 %v676, 48
        %v702 = vpop.permute.xlu0 %701
        %703 = vrot.lane.b32.xlu0 %v684, 48
        %v704 = vpop.permute.xlu0 %703
        %705 = vrot.lane.b32.xlu0 %v692, 48
        %v706 = vpop.permute.xlu0 %705
        %707 = vrot.lane.b32.xlu0 %v700, 48
        %v708 = vpop.permute.xlu0 %707
        %v710 = vunpack.c.l.b16 %v638
        %v711 = vpack.c.b16 %v650, %v710
        %v712 = vrot.slane %v711, 1
        %v713 = vrot.slane %v658, 1
        %v714 = vsel %vm350, %v712, %v713
        %v715 = vrot.slane %v659, 1
        %v716 = vsel %vm350, %v713, %v715
        %v717 = vrot.slane %v660, 1
        %v718 = vsel %vm350, %v715, %v717
        %v719 = vrot.slane %v663, 1
        %v720 = vsel %vm350, %v717, %v719
        %721 = vrot.lane.b32.xlu0 %v714, 96
        %v722 = vpop.permute.xlu0 %721
        %723 = vrot.lane.b32.xlu0 %v716, 96
        %v724 = vpop.permute.xlu0 %723
        %725 = vrot.lane.b32.xlu0 %v718, 96
        %v726 = vpop.permute.xlu0 %725
        %727 = vrot.lane.b32.xlu0 %v720, 96
        %v728 = vpop.permute.xlu0 %727
        %v730 = vunpack.c.l.b16 %v639
        %v731 = vpack.c.b16 %v730, %v730
        %vm732 = vsmask.f32 6400
        %v734 = vshrl.u32 %v711, 16
        %v736 = vrot.slane %v734, 1
        %v737 = vshll.u32 %v711, 16
        %v739 = vrot.slane %v737, 2
        %v740 = vor.u32 %v736, %v739
        %v741 = vrot.slane %v677, 1
        %v742 = vrot.slane %v673, 2
        %v743 = vor.u32 %v741, %v742
        %v744 = vsel %vm732, %v740, %v743
        %v745 = vrot.slane %v685, 1
        %v746 = vrot.slane %v681, 2
        %v747 = vor.u32 %v745, %v746
        %v748 = vsel %vm732, %v743, %v747
        %v749 = vrot.slane %v693, 1
        %v750 = vrot.slane %v689, 2
        %v751 = vor.u32 %v749, %v750
        %v752 = vsel %vm732, %v747, %v751
        %v754 = vshrl.u32 %v731, 16
        %v756 = vrot.slane %v754, 1
        %v757 = vshll.u32 %v731, 16
        %v759 = vrot.slane %v757, 2
        %v760 = vor.u32 %v756, %v759
        %v761 = vsel %vm732, %v751, %v760
        %762 = vrot.lane.b32.xlu0 %v744, 16
        %v763 = vpop.permute.xlu0 %762
        %764 = vrot.lane.b32.xlu0 %v748, 16
        %v765 = vpop.permute.xlu0 %764
        %766 = vrot.lane.b32.xlu0 %v752, 16
        %v767 = vpop.permute.xlu0 %766
        %768 = vrot.lane.b32.xlu0 %v761, 16
        %v769 = vpop.permute.xlu0 %768
        %v771 = vunpack.c.l.b16 %v640
        %v772 = vpack.c.b16 %v650, %v771
        %vm773 = vcmask 1045504
        %v774 = vrot.slane %v772, 2
        %v775 = vrot.slane %v658, 2
        %v776 = vsel %vm773, %v774, %v775
        %v777 = vrot.slane %v659, 2
        %v778 = vsel %vm773, %v775, %v777
        %v779 = vrot.slane %v660, 2
        %v780 = vsel %vm773, %v777, %v779
        %v781 = vrot.slane %v731, 2
        %v782 = vsel %vm773, %v779, %v781
        %783 = vrot.lane.b32.xlu0 %v776, 64
        %v784 = vpop.permute.xlu0 %783
        %785 = vrot.lane.b32.xlu0 %v778, 64
        %v786 = vpop.permute.xlu0 %785
        %787 = vrot.lane.b32.xlu0 %v780, 64
        %v788 = vpop.permute.xlu0 %787
        %789 = vrot.lane.b32.xlu0 %v782, 64
        %v790 = vpop.permute.xlu0 %789
        %vm791 = vcmask 392192
        %v793 = vsel %vm791, %v657, %v702
        %v795 = vsel %vm791, %v658, %v704
        %v797 = vsel %vm791, %v659, %v706
        %v799 = vsel %vm791, %v660, %v708
        %vm800 = vcmask 785408
        %v802 = vsel %vm800, %v793, %v722
        %v805 = vsel %vm800, %v795, %v724
        %v808 = vsel %vm800, %v797, %v726
        %v811 = vsel %vm800, %v799, %v728
        %v814 = vsel %vm370, %v722, %v763
        %v816 = vsel %vm370, %v724, %v765
        %v818 = vsel %vm370, %v726, %v767
        %v820 = vsel %vm370, %v728, %v769
        %vm821 = vcmask 523264
        %v823 = vsel %vm821, %v814, %v784
        %v825 = vsel %vm821, %v816, %v786
        %v827 = vsel %vm821, %v818, %v788
        %v829 = vsel %vm821, %v820, %v790
        %v830 = vld [vmem:[%s2] sm:$0xf]
        %v831 = vld [vmem:[%s2 + $0x4] sm:$0xf]
        %v832 = vld [vmem:[%s2 + $0x8] sm:$0xf]
        %v833 = vld [vmem:[%s2 + $0xc] sm:$0xf]
        %v834 = vld [vmem:[%s2 + $0x10] sm:$0xf]
        %v835 = vld [vmem:[%s2 + $0x14] sm:$0xf]
        %v836 = vld [vmem:[%s2 + $0x18] sm:$0xf]
        %v837 = vld [vmem:[%s2 + $0x1c] sm:$0xf]
        %v838 = vld [vmem:[%s2 + $0x20] sm:$0xf]
        %v839 = vld [vmem:[%s2 + $0x24] sm:$0xf]
        %v840 = vld [vmem:[%s2 + $0x28] sm:$0xf]
        %v841 = vld [vmem:[%s2 + $0x2c] sm:$0xf]
        %v842 = vld [vmem:[%s2 + $0x30] sm:$0xf]
        %v843 = vld [vmem:[%s2 + $0x34] sm:$0xf]
        %v844 = vld [vmem:[%s2 + $0x38] sm:$0xf]
        %v845 = vld [vmem:[%s2 + $0x3c] sm:$0xf]
        %v846 = vld [vmem:[%s2 + $0x40] sm:$0xf]
        %v847 = vld [vmem:[%s2 + $0x44] sm:$0xf]
        %v848 = vld [vmem:[%s2 + $0x48] sm:$0xf]
        %v849 = vld [vmem:[%s2 + $0x4c] sm:$0xf]
        %v850 = vld [vmem:[%s2 + $0x50] sm:$0xf]
        %v851 = vld [vmem:[%s2 + $0x54] sm:$0xf]
        %v852 = vld [vmem:[%s2 + $0x58] sm:$0xf]
        %v853 = vld [vmem:[%s2 + $0x5c] sm:$0xf]
        %v854 = vld [vmem:[%s2 + $0x60] sm:$0xf]
        %v855 = vld [vmem:[%s2 + $0x64] sm:$0xf]
        %v856 = vld [vmem:[%s2 + $0x68] sm:$0xf]
        %v857 = vld [vmem:[%s2 + $0x6c] sm:$0xf]
        %v858 = vld [vmem:[%s2 + $0x70] sm:$0xf]
        %v859 = vld [vmem:[%s2 + $0x74] sm:$0xf]
        %v860 = vld [vmem:[#allocation7 + $0x1] ss:$0 sm:$0xff]
        %v891 = vunpack.c.l.b16 %v830
        %v892 = vunpack.c.l.b16 %v831
        %v893 = vunpack.c.l.b16 %v832
        %v894 = vunpack.c.l.b16 %v833
        %v895 = vunpack.c.l.b16 %v834
        %v896 = vunpack.c.l.b16 %v835
        %v897 = vunpack.c.l.b16 %v836
        %v898 = vunpack.c.l.b16 %v837
        %v899 = vunpack.c.l.b16 %v838
        %v900 = vunpack.c.l.b16 %v839
        %v901 = vunpack.c.l.b16 %v840
        %v902 = vunpack.c.l.b16 %v841
        %v903 = vunpack.c.l.b16 %v842
        %v904 = vunpack.c.l.b16 %v843
        %v905 = vunpack.c.l.b16 %v844
        %v906 = vunpack.c.l.b16 %v845
        %v907 = vunpack.c.l.b16 %v846
        %v908 = vunpack.c.l.b16 %v847
        %v909 = vunpack.c.l.b16 %v848
        %v910 = vunpack.c.l.b16 %v849
        %v911 = vunpack.c.l.b16 %v850
        %v912 = vunpack.c.l.b16 %v851
        %v913 = vunpack.c.l.b16 %v852
        %v914 = vunpack.c.l.b16 %v853
        %v915 = vunpack.c.l.b16 %v854
        %v916 = vunpack.c.l.b16 %v855
        %v917 = vunpack.c.l.b16 %v856
        %v918 = vunpack.c.l.b16 %v857
        %v919 = vunpack.c.l.b16 %v858
        %v920 = vunpack.c.l.b16 %v859
        %v921 = vpack.c.b16 %v892, %v891
        %v922 = vpack.c.b16 %v894, %v893
        %v923 = vpack.c.b16 %v896, %v895
        %v924 = vpack.c.b16 %v898, %v897
        %v925 = vpack.c.b16 %v900, %v899
        %v926 = vpack.c.b16 %v902, %v901
        %v927 = vpack.c.b16 %v904, %v903
        %v928 = vpack.c.b16 %v906, %v905
        %v929 = vpack.c.b16 %v908, %v907
        %v930 = vpack.c.b16 %v910, %v909
        %v931 = vpack.c.b16 %v912, %v911
        %v932 = vpack.c.b16 %v914, %v913
        %v933 = vpack.c.b16 %v916, %v915
        %v934 = vpack.c.b16 %v918, %v917
        %v935 = vpack.c.b16 %v920, %v919
        %vm951 = vcmask 916480
        %v952 = vsel %vm951, %v823, 0
        %v954 = vsel %vm951, %v825, 0
        %v956 = vsel %vm951, %v827, 0
        %v958 = vsel %vm951, %v829, 0
        %960 = vmatpush.bf16.msra.mxu0 %v928
        %961 = vmatpush.bf16.msra.mxu0 %v927
        %962 = vmatpush.bf16.msra.mxu0 %v926
        %963 = vmatpush.bf16.msra.mxu0 %v925
        %964 = vmatpush.bf16.msra.mxu0 %v924
        %965 = vmatpush.bf16.msra.mxu0 %v923
        %966 = vmatpush.bf16.msra.mxu0 %v922
        %967 = vmatpush.bf16.msra.mxu0 %v921
        %968 = vmatmul.bf16.gmra.mxu0 %v802
        %v969 = vpop.f32.mrf.mxu0
        %v970 = vadd.f32 %v860, %v969
        %v971 = vpop.f32.mrf.mxu0
        %v972 = vadd.f32 %v860, %v971
        %973 = vmatmul.bf16.gmra.mxu0 %v805
        %v974 = vpop.f32.mrf.mxu0
        %v975 = vadd.f32 %v860, %v974
        %v976 = vpop.f32.mrf.mxu0
        %v977 = vadd.f32 %v860, %v976
        %978 = vmatmul.bf16.gmra.mxu0 %v808
        %v979 = vpop.f32.mrf.mxu0
        %v980 = vadd.f32 %v860, %v979
        %v981 = vpop.f32.mrf.mxu0
        %v982 = vadd.f32 %v860, %v981
        %983 = vmatmul.bf16.gmra.mxu0 %v811
        %v984 = vpop.f32.mrf.mxu0
        %v985 = vadd.f32 %v860, %v984
        %v986 = vpop.f32.mrf.mxu0
        %v987 = vadd.f32 %v860, %v986
        %988 = vdwg.mxu0
        %989 = vmatpush.bf16.msra.mxu0 0
        %990 = vmatpush.bf16.msra.mxu0 %v935
        %991 = vmatpush.bf16.msra.mxu0 %v934
        %992 = vmatpush.bf16.msra.mxu0 %v933
        %993 = vmatpush.bf16.msra.mxu0 %v932
        %994 = vmatpush.bf16.msra.mxu0 %v931
        %995 = vmatpush.bf16.msra.mxu0 %v930
        %996 = vmatpush.bf16.msra.mxu0 %v929
        %997 = vmatmul.bf16.gmra.mxu0 %v952
        %v998 = vpop.f32.mrf.mxu0
        %v999 = vadd.f32 %v970, %v998
        %v1000 = vpop.f32.mrf.mxu0
        %v1001 = vadd.f32 %v972, %v1000
        %1002 = vmatmul.bf16.gmra.mxu0 %v954
        %v1003 = vpop.f32.mrf.mxu0
        %v1004 = vadd.f32 %v975, %v1003
        %v1005 = vpop.f32.mrf.mxu0
        %v1006 = vadd.f32 %v977, %v1005
        %1007 = vmatmul.bf16.gmra.mxu0 %v956
        %v1008 = vpop.f32.mrf.mxu0
        %v1009 = vadd.f32 %v980, %v1008
        %v1010 = vpop.f32.mrf.mxu0
        %v1011 = vadd.f32 %v982, %v1010
        %1012 = vmatmul.bf16.gmra.mxu0 %v958
        %v1013 = vpop.f32.mrf.mxu0
        %v1014 = vadd.f32 %v985, %v1013
        %v1015 = vpop.f32.mrf.mxu0
        %v1016 = vadd.f32 %v987, %v1015
        %1017 = vdwg.mxu0
        %v1018 = vmax.f32 %v999, 0.0
        %v1019 = vmax.f32 %v1001, 0.0
        %v1020 = vmax.f32 %v1004, 0.0
        %v1021 = vmax.f32 %v1006, 0.0
        %v1022 = vmax.f32 %v1009, 0.0
        %v1023 = vmax.f32 %v1011, 0.0
        %v1024 = vmax.f32 %v1014, 0.0
        %v1025 = vmax.f32 %v1016, 0.0
        %v1026 = vld [vmem:[#allocation3] sm:$0xf]
        %v1027 = vld [vmem:[#allocation3 + $0x4] sm:$0xf]
        %v1028 = vld [vmem:[#allocation3 + $0x8] sm:$0xf]
        %v1029 = vld [vmem:[#allocation3 + $0xc] sm:$0xf]
        %v1030 = vld [vmem:[#allocation3 + $0x10] sm:$0xf]
        %v1031 = vld [vmem:[#allocation3 + $0x14] sm:$0xf]
        %v1032 = vld [vmem:[#allocation3 + $0x18] sm:$0xf]
        %v1033 = vld [vmem:[#allocation3 + $0x1c] sm:$0xf]
        %v1034 = vld [vmem:[#allocation3 + $0x20] sm:$0x1]
        %v1035 = vld [vmem:[#allocation3] sm:$0xe]
        %v1036 = vld [vmem:[#allocation3 + $0x20] sm:$0x3]
        %v1046 = vunpack.c.l.b16 %v1026
        %v1047 = vunpack.c.l.b16 %v1027
        %v1048 = vunpack.c.l.b16 %v1028
        %v1049 = vunpack.c.l.b16 %v1029
        %v1050 = vunpack.c.l.b16 %v1030
        %v1051 = vunpack.c.l.b16 %v1031
        %v1052 = vunpack.c.l.b16 %v1032
        %v1053 = vunpack.c.l.b16 %v1033
        %v1054 = vunpack.c.l.b16 %v1034
        %v1055 = vpack.c.b16 %v1047, %v1046
        %v1056 = vpack.c.b16 %v1049, %v1048
        %v1057 = vpack.c.b16 %v1051, %v1050
        %v1058 = vpack.c.b16 %v1053, %v1052
        %v1059 = vpack.c.b16 %v1054, %v1054
        %v1061 = vunpack.c.l.b16 %v1035
        %v1062 = vpack.c.b16 %v1047, %v1061
        %v1064 = vshrl.u32 %v1062, 16
        %v1066 = vshll.u32 %v1062, 16
        %v1068 = vrot.slane %v1066, 1
        %v1069 = vor.u32 %v1064, %v1068
        %v1071 = vshll.u32 %v1056, 16
        %v1073 = vrot.slane %v1071, 1
        %v1074 = vsel %vm664, %v1069, %v1073
        %v1075 = vshrl.u32 %v1056, 16
        %v1077 = vor.u32 %v1075, %v1073
        %v1079 = vshll.u32 %v1057, 16
        %v1081 = vrot.slane %v1079, 1
        %v1082 = vsel %vm664, %v1077, %v1081
        %v1083 = vshrl.u32 %v1057, 16
        %v1085 = vor.u32 %v1083, %v1081
        %v1087 = vshll.u32 %v1058, 16
        %v1089 = vrot.slane %v1087, 1
        %v1090 = vsel %vm664, %v1085, %v1089
        %v1091 = vshrl.u32 %v1058, 16
        %v1093 = vor.u32 %v1091, %v1089
        %v1095 = vshll.u32 %v1059, 16
        %v1097 = vrot.slane %v1095, 1
        %v1098 = vsel %vm664, %v1093, %v1097
        %v1099 = vshrl.u32 %v1059, 16
        %1101 = vrot.lane.b32.xlu0 %v1074, 64
        %v1102 = vpop.permute.xlu0 %1101
        %1103 = vrot.lane.b32.xlu0 %v1082, 64
        %v1104 = vpop.permute.xlu0 %1103
        %1105 = vrot.lane.b32.xlu0 %v1090, 64
        %v1106 = vpop.permute.xlu0 %1105
        %1107 = vrot.lane.b32.xlu0 %v1098, 64
        %v1108 = vpop.permute.xlu0 %1107
        %1109 = vrot.lane.b32.xlu0 %v1099, 64
        %v1110 = vpop.permute.xlu0 %1109
        %v1112 = vunpack.c.l.b16 %v1036
        %v1113 = vpack.c.b16 %v1112, %v1112
        %v1114 = vrot.slane %v1062, 1
        %v1115 = vrot.slane %v1056, 1
        %v1116 = vsel %vm350, %v1114, %v1115
        %v1117 = vrot.slane %v1057, 1
        %v1118 = vsel %vm350, %v1115, %v1117
        %v1119 = vrot.slane %v1058, 1
        %v1120 = vsel %vm350, %v1117, %v1119
        %v1121 = vrot.slane %v1113, 1
        %v1122 = vsel %vm350, %v1119, %v1121
        %v1125 = vsel %vm821, %v1055, %v1102
        %v1127 = vsel %vm821, %v1056, %v1104
        %v1129 = vsel %vm821, %v1057, %v1106
        %v1131 = vsel %vm821, %v1058, %v1108
        %v1133 = vsel %vm821, %v1059, %v1110
        %v1134 = vld [vmem:[%s3] sm:$0xf]
        %v1135 = vld [vmem:[%s3 + $0x4] sm:$0xf]
        %v1136 = vld [vmem:[%s3 + $0x8] sm:$0xf]
        %v1137 = vld [vmem:[%s3 + $0xc] sm:$0xf]
        %v1138 = vld [vmem:[%s3 + $0x10] sm:$0xf]
        %v1139 = vld [vmem:[%s3 + $0x14] sm:$0xf]
        %v1140 = vld [vmem:[%s3 + $0x18] sm:$0xf]
        %v1141 = vld [vmem:[%s3 + $0x1c] sm:$0xf]
        %v1142 = vld [vmem:[%s3 + $0x20] sm:$0xf]
        %v1143 = vld [vmem:[%s3 + $0x24] sm:$0xf]
        %v1144 = vld [vmem:[%s3 + $0x28] sm:$0xf]
        %v1145 = vld [vmem:[%s3 + $0x2c] sm:$0xf]
        %v1146 = vld [vmem:[%s3 + $0x30] sm:$0xf]
        %v1147 = vld [vmem:[%s3 + $0x34] sm:$0xf]
        %v1148 = vld [vmem:[%s3 + $0x38] sm:$0xf]
        %v1149 = vld [vmem:[%s3 + $0x3c] sm:$0xf]
        %v1150 = vld [vmem:[%s3 + $0x40] sm:$0xf]
        %v1151 = vld [vmem:[%s3 + $0x44] sm:$0xf]
        %v1152 = vld [vmem:[%s3 + $0x48] sm:$0xf]
        %v1153 = vld [vmem:[%s3 + $0x4c] sm:$0xf]
        %v1154 = vld [vmem:[%s3 + $0x50] sm:$0xf]
        %v1155 = vld [vmem:[%s3 + $0x54] sm:$0xf]
        %v1156 = vld [vmem:[%s3 + $0x58] sm:$0xf]
        %v1157 = vld [vmem:[%s3 + $0x5c] sm:$0xf]
        %v1158 = vld [vmem:[#allocation7 + $0x2] ss:$0 sm:$0xff]
        %v1159 = vshrl.u32 %v1125, 16
        %v1161 = vshll.u32 %v1125, 16
        %v1163 = vrot.slane %v1161, 1
        %v1164 = vor.u32 %v1159, %v1163
        %v1165 = vshll.u32 %v1127, 16
        %v1167 = vrot.slane %v1165, 1
        %v1168 = vsel %vm664, %v1164, %v1167
        %v1170 = vshrl.u32 %v1116, 16
        %v1172 = vshll.u32 %v1116, 16
        %v1174 = vrot.slane %v1172, 1
        %v1175 = vor.u32 %v1170, %v1174
        %v1177 = vshll.u32 %v1118, 16
        %v1179 = vrot.slane %v1177, 1
        %v1180 = vsel %vm664, %v1175, %v1179
        %v1181 = vshrl.u32 %v1127, 16
        %v1183 = vor.u32 %v1181, %v1167
        %v1184 = vshll.u32 %v1129, 16
        %v1186 = vrot.slane %v1184, 1
        %v1187 = vsel %vm664, %v1183, %v1186
        %v1188 = vshrl.u32 %v1118, 16
        %v1190 = vor.u32 %v1188, %v1179
        %v1192 = vshll.u32 %v1120, 16
        %v1194 = vrot.slane %v1192, 1
        %v1195 = vsel %vm664, %v1190, %v1194
        %v1196 = vshrl.u32 %v1129, 16
        %v1198 = vor.u32 %v1196, %v1186
        %v1199 = vshll.u32 %v1131, 16
        %v1201 = vrot.slane %v1199, 1
        %v1202 = vsel %vm664, %v1198, %v1201
        %v1203 = vshrl.u32 %v1120, 16
        %v1205 = vor.u32 %v1203, %v1194
        %v1207 = vshll.u32 %v1122, 16
        %v1209 = vrot.slane %v1207, 1
        %v1210 = vsel %vm664, %v1205, %v1209
        %v1211 = vshrl.u32 %v1131, 16
        %v1213 = vor.u32 %v1211, %v1201
        %v1214 = vshll.u32 %v1133, 16
        %v1216 = vrot.slane %v1214, 1
        %v1217 = vsel %vm664, %v1213, %v1216
        %v1218 = vshrl.u32 %v1122, 16
        %v1220 = vor.u32 %v1218, %v1209
        %v1222 = vshll.u32 %v1121, 16
        %v1224 = vrot.slane %v1222, 1
        %v1225 = vsel %vm664, %v1220, %v1224
        %v1254 = vunpack.c.l.b16 %v1134
        %v1255 = vunpack.c.l.b16 %v1135
        %v1256 = vunpack.c.l.b16 %v1136
        %v1257 = vunpack.c.l.b16 %v1137
        %v1258 = vunpack.c.l.b16 %v1138
        %v1259 = vunpack.c.l.b16 %v1139
        %v1260 = vunpack.c.l.b16 %v1140
        %v1261 = vunpack.c.l.b16 %v1141
        %v1262 = vunpack.c.l.b16 %v1142
        %v1263 = vunpack.c.l.b16 %v1143
        %v1264 = vunpack.c.l.b16 %v1144
        %v1265 = vunpack.c.l.b16 %v1145
        %v1266 = vunpack.c.l.b16 %v1146
        %v1267 = vunpack.c.l.b16 %v1147
        %v1268 = vunpack.c.l.b16 %v1148
        %v1269 = vunpack.c.l.b16 %v1149
        %v1270 = vunpack.c.l.b16 %v1150
        %v1271 = vunpack.c.l.b16 %v1151
        %v1272 = vunpack.c.l.b16 %v1152
        %v1273 = vunpack.c.l.b16 %v1153
        %v1274 = vunpack.c.l.b16 %v1154
        %v1275 = vunpack.c.l.b16 %v1155
        %v1276 = vunpack.c.l.b16 %v1156
        %v1277 = vunpack.c.l.b16 %v1157
        %v1278 = vpack.c.b16 %v1255, %v1254
        %v1279 = vpack.c.b16 %v1257, %v1256
        %v1280 = vpack.c.b16 %v1259, %v1258
        %v1281 = vpack.c.b16 %v1261, %v1260
        %v1282 = vpack.c.b16 %v1263, %v1262
        %v1283 = vpack.c.b16 %v1265, %v1264
        %v1284 = vpack.c.b16 %v1267, %v1266
        %v1285 = vpack.c.b16 %v1269, %v1268
        %v1286 = vpack.c.b16 %v1271, %v1270
        %v1287 = vpack.c.b16 %v1273, %v1272
        %v1288 = vpack.c.b16 %v1275, %v1274
        %v1289 = vpack.c.b16 %v1277, %v1276
        %v1303 = vsel %vm821, %v1180, 0
        %v1306 = vsel %vm821, %v1195, 0
        %v1309 = vsel %vm821, %v1210, 0
        %v1312 = vsel %vm821, %v1225, 0
        %1314 = vmatpush.bf16.msra.mxu0 %v1285
        %1315 = vmatpush.bf16.msra.mxu0 %v1284
        %1316 = vmatpush.bf16.msra.mxu0 %v1283
        %1317 = vmatpush.bf16.msra.mxu0 %v1282
        %1318 = vmatpush.bf16.msra.mxu0 %v1281
        %1319 = vmatpush.bf16.msra.mxu0 %v1280
        %1320 = vmatpush.bf16.msra.mxu0 %v1279
        %1321 = vmatpush.bf16.msra.mxu0 %v1278
        %1322 = vmatmul.bf16.gmra.mxu0 %v1168
        %v1323 = vpop.f32.mrf.mxu0
        %v1324 = vadd.f32 %v1158, %v1323
        %v1325 = vpop.f32.mrf.mxu0
        %v1326 = vadd.f32 %v1158, %v1325
        %1327 = vmatmul.bf16.gmra.mxu0 %v1187
        %v1328 = vpop.f32.mrf.mxu0
        %v1329 = vadd.f32 %v1158, %v1328
        %v1330 = vpop.f32.mrf.mxu0
        %v1331 = vadd.f32 %v1158, %v1330
        %1332 = vmatmul.bf16.gmra.mxu0 %v1202
        %v1333 = vpop.f32.mrf.mxu0
        %v1334 = vadd.f32 %v1158, %v1333
        %v1335 = vpop.f32.mrf.mxu0
        %v1336 = vadd.f32 %v1158, %v1335
        %1337 = vmatmul.bf16.gmra.mxu0 %v1217
        %v1338 = vpop.f32.mrf.mxu0
        %v1339 = vadd.f32 %v1158, %v1338
        %v1340 = vpop.f32.mrf.mxu0
        %v1341 = vadd.f32 %v1158, %v1340
        %1342 = vdwg.mxu0
        %1343 = vmatpush.bf16.msra.mxu0 0
        %1344 = vmatpush.bf16.msra.mxu0 0
        %1345 = vmatpush.bf16.msra.mxu0 0
        %1346 = vmatpush.bf16.msra.mxu0 0
        %1347 = vmatpush.bf16.msra.mxu0 %v1289
        %1348 = vmatpush.bf16.msra.mxu0 %v1288
        %1349 = vmatpush.bf16.msra.mxu0 %v1287
        %1350 = vmatpush.bf16.msra.mxu0 %v1286
        %1351 = vmatmul.bf16.gmra.mxu0 %v1303
        %v1352 = vpop.f32.mrf.mxu0
        %v1353 = vadd.f32 %v1324, %v1352
        %v1354 = vpop.f32.mrf.mxu0
        %v1355 = vadd.f32 %v1326, %v1354
        %1356 = vmatmul.bf16.gmra.mxu0 %v1306
        %v1357 = vpop.f32.mrf.mxu0
        %v1358 = vadd.f32 %v1329, %v1357
        %v1359 = vpop.f32.mrf.mxu0
        %v1360 = vadd.f32 %v1331, %v1359
        %1361 = vmatmul.bf16.gmra.mxu0 %v1309
        %v1362 = vpop.f32.mrf.mxu0
        %v1363 = vadd.f32 %v1334, %v1362
        %v1364 = vpop.f32.mrf.mxu0
        %v1365 = vadd.f32 %v1336, %v1364
        %1366 = vmatmul.bf16.gmra.mxu0 %v1312
        %v1367 = vpop.f32.mrf.mxu0
        %v1368 = vadd.f32 %v1339, %v1367
        %v1369 = vpop.f32.mrf.mxu0
        %v1370 = vadd.f32 %v1341, %v1369
        %1371 = vdwg.mxu0
        %v1372 = vmax.f32 %v1353, 0.0
        %v1373 = vmax.f32 %v1355, 0.0
        %v1374 = vmax.f32 %v1358, 0.0
        %v1375 = vmax.f32 %v1360, 0.0
        %v1376 = vmax.f32 %v1363, 0.0
        %v1377 = vmax.f32 %v1365, 0.0
        %v1378 = vmax.f32 %v1368, 0.0
        %v1379 = vmax.f32 %v1370, 0.0
        %v1388 = vrot.slane %v1372, 6
        %v1389 = vrot.slane %v1373, 6
        %v1390 = vsel %vm465, %v1388, %v1389
        %v1391 = vrot.slane %v1374, 6
        %v1392 = vsel %vm465, %v1389, %v1391
        %v1393 = vrot.slane %v1375, 6
        %v1394 = vsel %vm465, %v1391, %v1393
        %v1395 = vrot.slane %v1376, 6
        %v1396 = vsel %vm465, %v1393, %v1395
        %v1397 = vrot.slane %v1377, 6
        %v1398 = vsel %vm465, %v1395, %v1397
        %v1399 = vrot.slane %v1378, 6
        %v1400 = vsel %vm465, %v1397, %v1399
        %v1401 = vrot.slane %v1379, 6
        %v1402 = vsel %vm465, %v1399, %v1401
        %v1412 = vsel %vm465, 0.0, %v1388
        %v1413 = vsel %vm465, %v1401, 0.0
        %v1414 = vpack.c.bf16 %v1412, %v1412
        %v1415 = vpack.c.bf16 %v1390, %v1390
        %v1416 = vpack.c.bf16 %v1392, %v1392
        %v1417 = vpack.c.bf16 %v1394, %v1394
        %v1418 = vpack.c.bf16 %v1396, %v1396
        %v1419 = vpack.c.bf16 %v1398, %v1398
        %v1420 = vpack.c.bf16 %v1400, %v1400
        %v1421 = vpack.c.bf16 %v1402, %v1402
        %v1422 = vpack.c.bf16 %v1413, %v1413
        %vm1423 = vcmask 781312
        %1424 = vst.msk [vmem:[#allocation3] sm:$0xf] %vm1423, %v1414
        %1425 = vst.msk [vmem:[#allocation3 + $0x4] sm:$0xf] %vm1423, %v1415
        %1426 = vst.msk [vmem:[#allocation3 + $0x8] sm:$0xf] %vm1423, %v1416
        %1427 = vst.msk [vmem:[#allocation3 + $0xc] sm:$0xf] %vm1423, %v1417
        %1428 = vst.msk [vmem:[#allocation3 + $0x10] sm:$0xf] %vm1423, %v1418
        %1429 = vst.msk [vmem:[#allocation3 + $0x14] sm:$0xf] %vm1423, %v1419
        %1430 = vst.msk [vmem:[#allocation3 + $0x18] sm:$0xf] %vm1423, %v1420
        %1431 = vst.msk [vmem:[#allocation3 + $0x1c] sm:$0xf] %vm1423, %v1421
        %vm1432 = vcmask 779264
        %1433 = vst.msk [vmem:[#allocation3 + $0x20] sm:$0x3] %vm1432, %v1422
        %v1434 = vld [vmem:[#allocation3] sm:$0xf]
        %v1435 = vld [vmem:[#allocation3 + $0x4] sm:$0xf]
        %v1436 = vld [vmem:[#allocation3 + $0x8] sm:$0xf]
        %v1437 = vld [vmem:[#allocation3 + $0xc] sm:$0xf]
        %v1438 = vld [vmem:[#allocation3 + $0x10] sm:$0xf]
        %v1439 = vld [vmem:[#allocation3 + $0x14] sm:$0xf]
        %v1440 = vld [vmem:[#allocation3 + $0x18] sm:$0xf]
        %v1441 = vld [vmem:[#allocation3 + $0x1c] sm:$0xf]
        %v1442 = vld [vmem:[#allocation3 + $0x20] sm:$0x1]
        %v1443 = vld [vmem:[#allocation3] sm:$0xe]
        %v1444 = vld [vmem:[#allocation3 + $0x20] sm:$0x3]
        %v1454 = vunpack.c.l.b16 %v1434
        %v1455 = vunpack.c.l.b16 %v1435
        %v1456 = vunpack.c.l.b16 %v1436
        %v1457 = vunpack.c.l.b16 %v1437
        %v1458 = vunpack.c.l.b16 %v1438
        %v1459 = vunpack.c.l.b16 %v1439
        %v1460 = vunpack.c.l.b16 %v1440
        %v1461 = vunpack.c.l.b16 %v1441
        %v1462 = vunpack.c.l.b16 %v1442
        %v1463 = vpack.c.b16 %v1455, %v1454
        %v1464 = vpack.c.b16 %v1457, %v1456
        %v1465 = vpack.c.b16 %v1459, %v1458
        %v1466 = vpack.c.b16 %v1461, %v1460
        %v1467 = vpack.c.b16 %v1462, %v1462
        %v1469 = vunpack.c.l.b16 %v1443
        %v1470 = vpack.c.b16 %v1455, %v1469
        %v1472 = vshrl.u32 %v1470, 16
        %v1474 = vshll.u32 %v1470, 16
        %v1476 = vrot.slane %v1474, 1
        %v1477 = vor.u32 %v1472, %v1476
        %v1479 = vshll.u32 %v1464, 16
        %v1481 = vrot.slane %v1479, 1
        %v1482 = vsel %vm664, %v1477, %v1481
        %v1483 = vshrl.u32 %v1464, 16
        %v1485 = vor.u32 %v1483, %v1481
        %v1487 = vshll.u32 %v1465, 16
        %v1489 = vrot.slane %v1487, 1
        %v1490 = vsel %vm664, %v1485, %v1489
        %v1491 = vshrl.u32 %v1465, 16
        %v1493 = vor.u32 %v1491, %v1489
        %v1495 = vshll.u32 %v1466, 16
        %v1497 = vrot.slane %v1495, 1
        %v1498 = vsel %vm664, %v1493, %v1497
        %v1499 = vshrl.u32 %v1466, 16
        %v1501 = vor.u32 %v1499, %v1497
        %v1503 = vshll.u32 %v1467, 16
        %v1505 = vrot.slane %v1503, 1
        %v1506 = vsel %vm664, %v1501, %v1505
        %v1507 = vshrl.u32 %v1467, 16
        %1509 = vrot.lane.b32.xlu0 %v1482, 96
        %v1510 = vpop.permute.xlu0 %1509
        %1511 = vrot.lane.b32.xlu0 %v1490, 96
        %v1512 = vpop.permute.xlu0 %1511
        %1513 = vrot.lane.b32.xlu0 %v1498, 96
        %v1514 = vpop.permute.xlu0 %1513
        %1515 = vrot.lane.b32.xlu0 %v1506, 96
        %v1516 = vpop.permute.xlu0 %1515
        %1517 = vrot.lane.b32.xlu0 %v1507, 96
        %v1518 = vpop.permute.xlu0 %1517
        %v1520 = vunpack.c.l.b16 %v1444
        %v1521 = vpack.c.b16 %v1520, %v1520
        %v1522 = vrot.slane %v1470, 1
        %v1523 = vrot.slane %v1464, 1
        %v1524 = vsel %vm350, %v1522, %v1523
        %v1525 = vrot.slane %v1465, 1
        %v1526 = vsel %vm350, %v1523, %v1525
        %v1527 = vrot.slane %v1466, 1
        %v1528 = vsel %vm350, %v1525, %v1527
        %v1529 = vrot.slane %v1521, 1
        %v1530 = vsel %vm350, %v1527, %v1529
        %1531 = vrot.lane.b32.xlu0 %v1524, 64
        %v1532 = vpop.permute.xlu0 %1531
        %1533 = vrot.lane.b32.xlu0 %v1526, 64
        %v1534 = vpop.permute.xlu0 %1533
        %1535 = vrot.lane.b32.xlu0 %v1528, 64
        %v1536 = vpop.permute.xlu0 %1535
        %1537 = vrot.lane.b32.xlu0 %v1530, 64
        %v1538 = vpop.permute.xlu0 %1537
        %1539 = vrot.lane.b32.xlu0 %v1529, 64
        %v1540 = vpop.permute.xlu0 %1539
        %v1543 = vsel %vm800, %v1463, %v1510
        %v1545 = vsel %vm800, %v1464, %v1512
        %v1547 = vsel %vm800, %v1465, %v1514
        %v1549 = vsel %vm800, %v1466, %v1516
        %v1551 = vsel %vm800, %v1467, %v1518
        %v1553 = vsel %vm821, %v1510, %v1532
        %v1555 = vsel %vm821, %v1512, %v1534
        %v1557 = vsel %vm821, %v1514, %v1536
        %v1559 = vsel %vm821, %v1516, %v1538
        %v1561 = vsel %vm821, %v1518, %v1540
        %v1562 = vld [vmem:[%s4] sm:$0xf]
        %v1563 = vld [vmem:[%s4 + $0x4] sm:$0xf]
        %v1564 = vld [vmem:[%s4 + $0x8] sm:$0xf]
        %v1565 = vld [vmem:[%s4 + $0xc] sm:$0xf]
        %v1566 = vld [vmem:[%s4 + $0x10] sm:$0xf]
        %v1567 = vld [vmem:[%s4 + $0x14] sm:$0xf]
        %v1568 = vld [vmem:[%s4 + $0x18] sm:$0xf]
        %v1569 = vld [vmem:[%s4 + $0x1c] sm:$0xf]
        %v1570 = vld [vmem:[%s4 + $0x20] sm:$0xf]
        %v1571 = vld [vmem:[%s4 + $0x24] sm:$0xf]
        %v1572 = vld [vmem:[%s4 + $0x28] sm:$0xf]
        %v1573 = vld [vmem:[%s4 + $0x2c] sm:$0xf]
        %v1574 = vld [vmem:[%s4 + $0x30] sm:$0xf]
        %v1575 = vld [vmem:[%s4 + $0x34] sm:$0xf]
        %v1576 = vld [vmem:[%s4 + $0x38] sm:$0xf]
        %v1577 = vld [vmem:[%s4 + $0x3c] sm:$0xf]
        %v1578 = vld [vmem:[%s4 + $0x40] sm:$0xf]
        %v1579 = vld [vmem:[%s4 + $0x44] sm:$0xf]
        %v1580 = vld [vmem:[%s4 + $0x48] sm:$0xf]
        %v1581 = vld [vmem:[%s4 + $0x4c] sm:$0xf]
        %v1582 = vld [vmem:[%s4 + $0x50] sm:$0xf]
        %v1583 = vld [vmem:[%s4 + $0x54] sm:$0xf]
        %v1584 = vld [vmem:[%s4 + $0x58] sm:$0xf]
        %v1585 = vld [vmem:[%s4 + $0x5c] sm:$0xf]
        %v1586 = vld [vmem:[%s4 + $0x60] sm:$0xf]
        %v1587 = vld [vmem:[%s4 + $0x64] sm:$0xf]
        %v1588 = vld [vmem:[%s4 + $0x68] sm:$0xf]
        %v1589 = vld [vmem:[%s4 + $0x6c] sm:$0xf]
        %v1590 = vld [vmem:[%s4 + $0x70] sm:$0xf]
        %v1591 = vld [vmem:[%s4 + $0x74] sm:$0xf]
        %v1592 = vld [vmem:[%s4 + $0x78] sm:$0xf]
        %v1593 = vld [vmem:[%s4 + $0x7c] sm:$0xf]
        %v1594 = vld [vmem:[%s4 + $0x80] sm:$0xf]
        %v1595 = vld [vmem:[%s4 + $0x84] sm:$0xf]
        %v1596 = vld [vmem:[%s4 + $0x88] sm:$0xf]
        %v1597 = vld [vmem:[%s4 + $0x8c] sm:$0xf]
        %v1598 = vld [vmem:[#allocation7 + $0x3] ss:$0 sm:$0xff]
        %v1599 = vshrl.u32 %v1543, 16
        %v1601 = vshll.u32 %v1543, 16
        %v1603 = vrot.slane %v1601, 1
        %v1604 = vor.u32 %v1599, %v1603
        %v1605 = vshll.u32 %v1545, 16
        %v1607 = vrot.slane %v1605, 1
        %v1608 = vsel %vm664, %v1604, %v1607
        %v1609 = vshrl.u32 %v1553, 16
        %v1611 = vshll.u32 %v1553, 16
        %v1613 = vrot.slane %v1611, 1
        %v1614 = vor.u32 %v1609, %v1613
        %v1615 = vshll.u32 %v1555, 16
        %v1617 = vrot.slane %v1615, 1
        %v1618 = vsel %vm664, %v1614, %v1617
        %v1619 = vshrl.u32 %v1532, 16
        %v1621 = vshll.u32 %v1532, 16
        %v1623 = vrot.slane %v1621, 1
        %v1624 = vor.u32 %v1619, %v1623
        %v1625 = vshll.u32 %v1534, 16
        %v1627 = vrot.slane %v1625, 1
        %v1628 = vsel %vm664, %v1624, %v1627
        %v1629 = vshrl.u32 %v1545, 16
        %v1631 = vor.u32 %v1629, %v1607
        %v1632 = vshll.u32 %v1547, 16
        %v1634 = vrot.slane %v1632, 1
        %v1635 = vsel %vm664, %v1631, %v1634
        %v1636 = vshrl.u32 %v1555, 16
        %v1638 = vor.u32 %v1636, %v1617
        %v1639 = vshll.u32 %v1557, 16
        %v1641 = vrot.slane %v1639, 1
        %v1642 = vsel %vm664, %v1638, %v1641
        %v1643 = vshrl.u32 %v1534, 16
        %v1645 = vor.u32 %v1643, %v1627
        %v1646 = vshll.u32 %v1536, 16
        %v1648 = vrot.slane %v1646, 1
        %v1649 = vsel %vm664, %v1645, %v1648
        %v1650 = vshrl.u32 %v1547, 16
        %v1652 = vor.u32 %v1650, %v1634
        %v1653 = vshll.u32 %v1549, 16
        %v1655 = vrot.slane %v1653, 1
        %v1656 = vsel %vm664, %v1652, %v1655
        %v1657 = vshrl.u32 %v1557, 16
        %v1659 = vor.u32 %v1657, %v1641
        %v1660 = vshll.u32 %v1559, 16
        %v1662 = vrot.slane %v1660, 1
        %v1663 = vsel %vm664, %v1659, %v1662
        %v1664 = vshrl.u32 %v1536, 16
        %v1666 = vor.u32 %v1664, %v1648
        %v1667 = vshll.u32 %v1538, 16
        %v1669 = vrot.slane %v1667, 1
        %v1670 = vsel %vm664, %v1666, %v1669
        %v1671 = vshrl.u32 %v1549, 16
        %v1673 = vor.u32 %v1671, %v1655
        %v1674 = vshll.u32 %v1551, 16
        %v1676 = vrot.slane %v1674, 1
        %v1677 = vsel %vm664, %v1673, %v1676
        %v1678 = vshrl.u32 %v1559, 16
        %v1680 = vor.u32 %v1678, %v1662
        %v1681 = vshll.u32 %v1561, 16
        %v1683 = vrot.slane %v1681, 1
        %v1684 = vsel %vm664, %v1680, %v1683
        %v1685 = vshrl.u32 %v1538, 16
        %v1687 = vor.u32 %v1685, %v1669
        %v1688 = vshll.u32 %v1540, 16
        %v1690 = vrot.slane %v1688, 1
        %v1691 = vsel %vm664, %v1687, %v1690
        %v1736 = vunpack.c.l.b16 %v1562
        %v1737 = vunpack.c.l.b16 %v1563
        %v1738 = vunpack.c.l.b16 %v1564
        %v1739 = vunpack.c.l.b16 %v1565
        %v1740 = vunpack.c.l.b16 %v1566
        %v1741 = vunpack.c.l.b16 %v1567
        %v1742 = vunpack.c.l.b16 %v1568
        %v1743 = vunpack.c.l.b16 %v1569
        %v1744 = vunpack.c.l.b16 %v1570
        %v1745 = vunpack.c.l.b16 %v1571
        %v1746 = vunpack.c.l.b16 %v1572
        %v1747 = vunpack.c.l.b16 %v1573
        %v1748 = vunpack.c.l.b16 %v1574
        %v1749 = vunpack.c.l.b16 %v1575
        %v1750 = vunpack.c.l.b16 %v1576
        %v1751 = vunpack.c.l.b16 %v1577
        %v1752 = vunpack.c.l.b16 %v1578
        %v1753 = vunpack.c.l.b16 %v1579
        %v1754 = vunpack.c.l.b16 %v1580
        %v1755 = vunpack.c.l.b16 %v1581
        %v1756 = vunpack.c.l.b16 %v1582
        %v1757 = vunpack.c.l.b16 %v1583
        %v1758 = vunpack.c.l.b16 %v1584
        %v1759 = vunpack.c.l.b16 %v1585
        %v1760 = vunpack.c.l.b16 %v1586
        %v1761 = vunpack.c.l.b16 %v1587
        %v1762 = vunpack.c.l.b16 %v1588
        %v1763 = vunpack.c.l.b16 %v1589
        %v1764 = vunpack.c.l.b16 %v1590
        %v1765 = vunpack.c.l.b16 %v1591
        %v1766 = vunpack.c.l.b16 %v1592
        %v1767 = vunpack.c.l.b16 %v1593
        %v1768 = vunpack.c.l.b16 %v1594
        %v1769 = vunpack.c.l.b16 %v1595
        %v1770 = vunpack.c.l.b16 %v1596
        %v1771 = vunpack.c.l.b16 %v1597
        %v1772 = vpack.c.b16 %v1737, %v1736
        %v1773 = vpack.c.b16 %v1739, %v1738
        %v1774 = vpack.c.b16 %v1741, %v1740
        %v1775 = vpack.c.b16 %v1743, %v1742
        %v1776 = vpack.c.b16 %v1745, %v1744
        %v1777 = vpack.c.b16 %v1747, %v1746
        %v1778 = vpack.c.b16 %v1749, %v1748
        %v1779 = vpack.c.b16 %v1751, %v1750
        %v1780 = vpack.c.b16 %v1753, %v1752
        %v1781 = vpack.c.b16 %v1755, %v1754
        %v1782 = vpack.c.b16 %v1757, %v1756
        %v1783 = vpack.c.b16 %v1759, %v1758
        %v1784 = vpack.c.b16 %v1761, %v1760
        %v1785 = vpack.c.b16 %v1763, %v1762
        %v1786 = vpack.c.b16 %v1765, %v1764
        %v1787 = vpack.c.b16 %v1767, %v1766
        %v1788 = vpack.c.b16 %v1769, %v1768
        %v1789 = vpack.c.b16 %v1771, %v1770
        %vm1808 = vcmask 261120
        %v1810 = vsel %vm1808, %v1628, 0
        %v1813 = vsel %vm1808, %v1649, 0
        %v1816 = vsel %vm1808, %v1670, 0
        %v1819 = vsel %vm1808, %v1691, 0
        %1821 = vmatpush.bf16.msra.mxu0 %v1779
        %1822 = vmatpush.bf16.msra.mxu0 %v1778
        %1823 = vmatpush.bf16.msra.mxu0 %v1777
        %1824 = vmatpush.bf16.msra.mxu0 %v1776
        %1825 = vmatpush.bf16.msra.mxu0 %v1775
        %1826 = vmatpush.bf16.msra.mxu0 %v1774
        %1827 = vmatpush.bf16.msra.mxu0 %v1773
        %1828 = vmatpush.bf16.msra.mxu0 %v1772
        %1829 = vmatmul.bf16.gmra.mxu0 %v1608
        %v1830 = vpop.f32.mrf.mxu0
        %v1831 = vadd.f32 %v1598, %v1830
        %v1832 = vpop.f32.mrf.mxu0
        %v1833 = vadd.f32 %v1598, %v1832
        %1834 = vmatmul.bf16.gmra.mxu0 %v1635
        %v1835 = vpop.f32.mrf.mxu0
        %v1836 = vadd.f32 %v1598, %v1835
        %v1837 = vpop.f32.mrf.mxu0
        %v1838 = vadd.f32 %v1598, %v1837
        %1839 = vmatmul.bf16.gmra.mxu0 %v1656
        %v1840 = vpop.f32.mrf.mxu0
        %v1841 = vadd.f32 %v1598, %v1840
        %v1842 = vpop.f32.mrf.mxu0
        %v1843 = vadd.f32 %v1598, %v1842
        %1844 = vmatmul.bf16.gmra.mxu0 %v1677
        %v1845 = vpop.f32.mrf.mxu0
        %v1846 = vadd.f32 %v1598, %v1845
        %v1847 = vpop.f32.mrf.mxu0
        %v1848 = vadd.f32 %v1598, %v1847
        %1849 = vdwg.mxu0
        %1850 = vmatpush.bf16.msra.mxu0 %v1787
        %1851 = vmatpush.bf16.msra.mxu0 %v1786
        %1852 = vmatpush.bf16.msra.mxu0 %v1785
        %1853 = vmatpush.bf16.msra.mxu0 %v1784
        %1854 = vmatpush.bf16.msra.mxu0 %v1783
        %1855 = vmatpush.bf16.msra.mxu0 %v1782
        %1856 = vmatpush.bf16.msra.mxu0 %v1781
        %1857 = vmatpush.bf16.msra.mxu0 %v1780
        %1858 = vmatmul.bf16.gmra.mxu0 %v1618
        %v1859 = vpop.f32.mrf.mxu0
        %v1860 = vadd.f32 %v1831, %v1859
        %v1861 = vpop.f32.mrf.mxu0
        %v1862 = vadd.f32 %v1833, %v1861
        %1863 = vmatmul.bf16.gmra.mxu0 %v1642
        %v1864 = vpop.f32.mrf.mxu0
        %v1865 = vadd.f32 %v1836, %v1864
        %v1866 = vpop.f32.mrf.mxu0
        %v1867 = vadd.f32 %v1838, %v1866
        %1868 = vmatmul.bf16.gmra.mxu0 %v1663
        %v1869 = vpop.f32.mrf.mxu0
        %v1870 = vadd.f32 %v1841, %v1869
        %v1871 = vpop.f32.mrf.mxu0
        %v1872 = vadd.f32 %v1843, %v1871
        %1873 = vmatmul.bf16.gmra.mxu0 %v1684
        %v1874 = vpop.f32.mrf.mxu0
        %v1875 = vadd.f32 %v1846, %v1874
        %v1876 = vpop.f32.mrf.mxu0
        %v1877 = vadd.f32 %v1848, %v1876
        %1878 = vdwg.mxu0
        %1879 = vmatpush.bf16.msra.mxu0 0
        %1880 = vmatpush.bf16.msra.mxu0 0
        %1881 = vmatpush.bf16.msra.mxu0 0
        %1882 = vmatpush.bf16.msra.mxu0 0
        %1883 = vmatpush.bf16.msra.mxu0 0
        %1884 = vmatpush.bf16.msra.mxu0 0
        %1885 = vmatpush.bf16.msra.mxu0 %v1789
        %1886 = vmatpush.bf16.msra.mxu0 %v1788
        %1887 = vmatmul.bf16.gmra.mxu0 %v1810
        %v1888 = vpop.f32.mrf.mxu0
        %v1889 = vadd.f32 %v1860, %v1888
        %v1890 = vpop.f32.mrf.mxu0
        %v1891 = vadd.f32 %v1862, %v1890
        %1892 = vmatmul.bf16.gmra.mxu0 %v1813
        %v1893 = vpop.f32.mrf.mxu0
        %v1894 = vadd.f32 %v1865, %v1893
        %v1895 = vpop.f32.mrf.mxu0
        %v1896 = vadd.f32 %v1867, %v1895
        %1897 = vmatmul.bf16.gmra.mxu0 %v1816
        %v1898 = vpop.f32.mrf.mxu0
        %v1899 = vadd.f32 %v1870, %v1898
        %v1900 = vpop.f32.mrf.mxu0
        %v1901 = vadd.f32 %v1872, %v1900
        %1902 = vmatmul.bf16.gmra.mxu0 %v1819
        %v1903 = vpop.f32.mrf.mxu0
        %v1904 = vadd.f32 %v1875, %v1903
        %v1905 = vpop.f32.mrf.mxu0
        %v1906 = vadd.f32 %v1877, %v1905
        %1907 = vdwg.mxu0
        %v1908 = vmax.f32 %v1889, 0.0
        %v1909 = vmax.f32 %v1891, 0.0
        %v1910 = vmax.f32 %v1894, 0.0
        %v1911 = vmax.f32 %v1896, 0.0
        %v1912 = vmax.f32 %v1899, 0.0
        %v1913 = vmax.f32 %v1901, 0.0
        %v1914 = vmax.f32 %v1904, 0.0
        %v1915 = vmax.f32 %v1906, 0.0
        %v1916 = vld [vmem:[%s308] sm:$0xf]
        %v1917 = vld [vmem:[%s308 + $0x4] sm:$0xf]
        %v1918 = vld [vmem:[%s308 + $0x8] sm:$0xf]
        %v1919 = vld [vmem:[%s308 + $0xc] sm:$0xf]
        %v1920 = vld [vmem:[%s308 + $0x10] sm:$0xf]
        %v1921 = vld [vmem:[%s308 + $0x14] sm:$0xf]
        %v1922 = vld [vmem:[%s308 + $0x18] sm:$0xf]
        %v1923 = vld [vmem:[%s308 + $0x1c] sm:$0xf]
        %v1924 = vld [vmem:[%s308 + $0x20] sm:$0x1]
        %v1925 = vunpack.c.l.bf16 %v1916
        %v1926 = vunpack.c.l.bf16 %v1917
        %v1927 = vunpack.c.l.bf16 %v1918
        %v1928 = vunpack.c.l.bf16 %v1919
        %v1929 = vunpack.c.l.bf16 %v1920
        %v1930 = vunpack.c.l.bf16 %v1921
        %v1931 = vunpack.c.l.bf16 %v1922
        %v1932 = vunpack.c.l.bf16 %v1923
        %v1933 = vunpack.c.l.bf16 %v1924
        %v1934 = vld [vmem:[%s308] sm:$0xe]
        %v1935 = vunpack.c.l.bf16 %v1934
        %v1936 = vld [vmem:[%s308 + $0x20] sm:$0x3]
        %v1937 = vunpack.c.l.bf16 %v1936
        %vm1947 = vcmask 1046528
        %v1948 = vrot.slane %v1935, 1
        %v1949 = vrot.slane %v1926, 1
        %v1950 = vsel %vm1947, %v1948, %v1949
        %v1951 = vrot.slane %v1927, 1
        %v1952 = vsel %vm1947, %v1949, %v1951
        %v1953 = vrot.slane %v1928, 1
        %v1954 = vsel %vm1947, %v1951, %v1953
        %v1955 = vrot.slane %v1929, 1
        %v1956 = vsel %vm1947, %v1953, %v1955
        %v1957 = vrot.slane %v1930, 1
        %v1958 = vsel %vm1947, %v1955, %v1957
        %v1959 = vrot.slane %v1931, 1
        %v1960 = vsel %vm1947, %v1957, %v1959
        %v1961 = vrot.slane %v1932, 1
        %v1962 = vsel %vm1947, %v1959, %v1961
        %v1963 = vrot.slane %v1933, 1
        %v1964 = vsel %vm1947, %v1961, %v1963
        %v1974 = vadd.f32 %v1925, %v1950
        %v1975 = vadd.f32 %v1926, %v1952
        %v1976 = vadd.f32 %v1927, %v1954
        %v1977 = vadd.f32 %v1928, %v1956
        %v1978 = vadd.f32 %v1929, %v1958
        %v1979 = vadd.f32 %v1930, %v1960
        %v1980 = vadd.f32 %v1931, %v1962
        %v1981 = vadd.f32 %v1932, %v1964
        %v1982 = vadd.f32 %v1933, %v1963
        %vm1984 = vcmask 1045504
        %v1985 = vrot.slane %v1935, 2
        %v1986 = vrot.slane %v1926, 2
        %v1987 = vsel %vm1984, %v1985, %v1986
        %v1988 = vrot.slane %v1927, 2
        %v1989 = vsel %vm1984, %v1986, %v1988
        %v1990 = vrot.slane %v1928, 2
        %v1991 = vsel %vm1984, %v1988, %v1990
        %v1992 = vrot.slane %v1929, 2
        %v1993 = vsel %vm1984, %v1990, %v1992
        %v1994 = vrot.slane %v1930, 2
        %v1995 = vsel %vm1984, %v1992, %v1994
        %v1996 = vrot.slane %v1931, 2
        %v1997 = vsel %vm1984, %v1994, %v1996
        %v1998 = vrot.slane %v1932, 2
        %v1999 = vsel %vm1984, %v1996, %v1998
        %v2000 = vrot.slane %v1937, 2
        %v2001 = vsel %vm1984, %v1998, %v2000
        %v2011 = vadd.f32 %v1974, %v1987
        %v2012 = vadd.f32 %v1975, %v1989
        %v2013 = vadd.f32 %v1976, %v1991
        %v2014 = vadd.f32 %v1977, %v1993
        %v2015 = vadd.f32 %v1978, %v1995
        %v2016 = vadd.f32 %v1979, %v1997
        %v2017 = vadd.f32 %v1980, %v1999
        %v2018 = vadd.f32 %v1981, %v2001
        %v2019 = vadd.f32 %v1982, %v2000
        %v2020 = vmul.f32 %v2011, 0.33333334
        %v2021 = vmul.f32 %v2012, 0.33333334
        %v2022 = vmul.f32 %v2013, 0.33333334
        %v2023 = vmul.f32 %v2014, 0.33333334
        %v2024 = vmul.f32 %v2015, 0.33333334
        %v2025 = vmul.f32 %v2016, 0.33333334
        %v2026 = vmul.f32 %v2017, 0.33333334
        %v2027 = vmul.f32 %v2018, 0.33333334
        %v2028 = vmul.f32 %v2019, 0.33333334
        %vm2038 = vcmask 1040384
        %v2039 = vrot.slane %v2020, 7
        %v2040 = vrot.slane %v2021, 7
        %v2041 = vsel %vm2038, %v2039, %v2040
        %v2042 = vrot.slane %v2022, 7
        %v2043 = vsel %vm2038, %v2040, %v2042
        %v2044 = vrot.slane %v2023, 7
        %v2045 = vsel %vm2038, %v2042, %v2044
        %v2046 = vrot.slane %v2024, 7
        %v2047 = vsel %vm2038, %v2044, %v2046
        %v2048 = vrot.slane %v2025, 7
        %v2049 = vsel %vm2038, %v2046, %v2048
        %v2050 = vrot.slane %v2026, 7
        %v2051 = vsel %vm2038, %v2048, %v2050
        %v2052 = vrot.slane %v2027, 7
        %v2053 = vsel %vm2038, %v2050, %v2052
        %v2054 = vrot.slane %v2028, 7
        %v2055 = vsel %vm2038, %v2052, %v2054
        %v2065 = vsel %vm465, 0.0, %v2039
        %v2066 = vsel %vm465, %v2055, 0.0
        %v2067 = vpack.c.bf16 %v2065, %v2065
        %v2068 = vpack.c.bf16 %v2041, %v2041
        %v2069 = vpack.c.bf16 %v2043, %v2043
        %v2070 = vpack.c.bf16 %v2045, %v2045
        %v2071 = vpack.c.bf16 %v2047, %v2047
        %v2072 = vpack.c.bf16 %v2049, %v2049
        %v2073 = vpack.c.bf16 %v2051, %v2051
        %v2074 = vpack.c.bf16 %v2053, %v2053
        %v2075 = vpack.c.bf16 %v2066, %v2066
        %vm2076 = vcmask 125952
        %2077 = vst.msk [vmem:[#allocation2] sm:$0xf] %vm2076, %v2067
        %2078 = vst.msk [vmem:[#allocation2 + $0x4] sm:$0xf] %vm2076, %v2068
        %2079 = vst.msk [vmem:[#allocation2 + $0x8] sm:$0xf] %vm2076, %v2069
        %2080 = vst.msk [vmem:[#allocation2 + $0xc] sm:$0xf] %vm2076, %v2070
        %2081 = vst.msk [vmem:[#allocation2 + $0x10] sm:$0xf] %vm2076, %v2071
        %2082 = vst.msk [vmem:[#allocation2 + $0x14] sm:$0xf] %vm2076, %v2072
        %2083 = vst.msk [vmem:[#allocation2 + $0x18] sm:$0xf] %vm2076, %v2073
        %2084 = vst.msk [vmem:[#allocation2 + $0x1c] sm:$0xf] %vm2076, %v2074
        %vm2085 = vcmask 123904
        %2086 = vst.msk [vmem:[#allocation2 + $0x20] sm:$0x3] %vm2085, %v2075
        %v2087 = vld [vmem:[#allocation2] sm:$0xf]
        %v2088 = vld [vmem:[#allocation2 + $0x4] sm:$0xf]
        %v2089 = vld [vmem:[#allocation2 + $0x8] sm:$0xf]
        %v2090 = vld [vmem:[#allocation2 + $0xc] sm:$0xf]
        %v2091 = vld [vmem:[#allocation2 + $0x10] sm:$0xf]
        %v2092 = vld [vmem:[#allocation2 + $0x14] sm:$0xf]
        %v2093 = vld [vmem:[#allocation2 + $0x18] sm:$0xf]
        %v2094 = vld [vmem:[#allocation2 + $0x1c] sm:$0xf]
        %v2095 = vld [vmem:[#allocation2 + $0x20] sm:$0x1]
        %v2096 = vld [vmem:[#allocation2] sm:$0xe]
        %v2097 = vld [vmem:[#allocation2 + $0x20] sm:$0x3]
        %v2107 = vunpack.c.l.b16 %v2087
        %v2108 = vunpack.c.l.b16 %v2088
        %v2109 = vunpack.c.l.b16 %v2089
        %v2110 = vunpack.c.l.b16 %v2090
        %v2111 = vunpack.c.l.b16 %v2091
        %v2112 = vunpack.c.l.b16 %v2092
        %v2113 = vunpack.c.l.b16 %v2093
        %v2114 = vunpack.c.l.b16 %v2094
        %v2115 = vunpack.c.l.b16 %v2095
        %v2116 = vpack.c.b16 %v2108, %v2107
        %v2117 = vpack.c.b16 %v2110, %v2109
        %v2118 = vpack.c.b16 %v2112, %v2111
        %v2119 = vpack.c.b16 %v2114, %v2113
        %v2120 = vpack.c.b16 %v2115, %v2115
        %v2122 = vunpack.c.l.b16 %v2096
        %v2123 = vpack.c.b16 %v2108, %v2122
        %v2125 = vshrl.u32 %v2123, 16
        %v2127 = vshll.u32 %v2123, 16
        %v2129 = vrot.slane %v2127, 1
        %v2130 = vor.u32 %v2125, %v2129
        %v2132 = vshll.u32 %v2117, 16
        %v2134 = vrot.slane %v2132, 1
        %v2135 = vsel %vm664, %v2130, %v2134
        %v2136 = vshrl.u32 %v2117, 16
        %v2138 = vor.u32 %v2136, %v2134
        %v2140 = vshll.u32 %v2118, 16
        %v2142 = vrot.slane %v2140, 1
        %v2143 = vsel %vm664, %v2138, %v2142
        %v2144 = vshrl.u32 %v2118, 16
        %v2146 = vor.u32 %v2144, %v2142
        %v2148 = vshll.u32 %v2119, 16
        %v2150 = vrot.slane %v2148, 1
        %v2151 = vsel %vm664, %v2146, %v2150
        %v2152 = vshrl.u32 %v2119, 16
        %v2154 = vor.u32 %v2152, %v2150
        %v2156 = vshll.u32 %v2120, 16
        %v2158 = vrot.slane %v2156, 1
        %v2159 = vsel %vm664, %v2154, %v2158
        %v2160 = vshrl.u32 %v2120, 16
        %2162 = vrot.lane.b32.xlu0 %v2135, 16
        %v2163 = vpop.permute.xlu0 %2162
        %2164 = vrot.lane.b32.xlu0 %v2143, 16
        %v2165 = vpop.permute.xlu0 %2164
        %2166 = vrot.lane.b32.xlu0 %v2151, 16
        %v2167 = vpop.permute.xlu0 %2166
        %2168 = vrot.lane.b32.xlu0 %v2159, 16
        %v2169 = vpop.permute.xlu0 %2168
        %2170 = vrot.lane.b32.xlu0 %v2160, 16
        %v2171 = vpop.permute.xlu0 %2170
        %v2173 = vunpack.c.l.b16 %v2097
        %v2174 = vpack.c.b16 %v2173, %v2173
        %v2175 = vrot.slane %v2123, 1
        %v2176 = vrot.slane %v2117, 1
        %v2177 = vsel %vm350, %v2175, %v2176
        %v2178 = vrot.slane %v2118, 1
        %v2179 = vsel %vm350, %v2176, %v2178
        %v2180 = vrot.slane %v2119, 1
        %v2181 = vsel %vm350, %v2178, %v2180
        %v2182 = vrot.slane %v2174, 1
        %v2183 = vsel %vm350, %v2180, %v2182
        %2184 = vrot.lane.b32.xlu0 %v2177, 32
        %v2185 = vpop.permute.xlu0 %2184
        %2186 = vrot.lane.b32.xlu0 %v2179, 32
        %v2187 = vpop.permute.xlu0 %2186
        %2188 = vrot.lane.b32.xlu0 %v2181, 32
        %v2189 = vpop.permute.xlu0 %2188
        %2190 = vrot.lane.b32.xlu0 %v2183, 32
        %v2191 = vpop.permute.xlu0 %2190
        %2192 = vrot.lane.b32.xlu0 %v2182, 32
        %v2193 = vpop.permute.xlu0 %2192
        %v2196 = vsel %vm370, %v2116, %v2163
        %v2198 = vsel %vm370, %v2117, %v2165
        %v2200 = vsel %vm370, %v2118, %v2167
        %v2202 = vsel %vm370, %v2119, %v2169
        %v2204 = vsel %vm370, %v2120, %v2171
        %v2206 = vsel %vm1808, %v2196, %v2185
        %v2208 = vsel %vm1808, %v2198, %v2187
        %v2210 = vsel %vm1808, %v2200, %v2189
        %v2212 = vsel %vm1808, %v2202, %v2191
        %v2214 = vsel %vm1808, %v2204, %v2193
        %v2215 = vld [vmem:[%s5] sm:$0xf]
        %v2216 = vld [vmem:[%s5 + $0x4] sm:$0xf]
        %v2217 = vld [vmem:[%s5 + $0x8] sm:$0xf]
        %v2218 = vld [vmem:[%s5 + $0xc] sm:$0xf]
        %v2219 = vld [vmem:[%s5 + $0x10] sm:$0xf]
        %v2220 = vld [vmem:[%s5 + $0x14] sm:$0xf]
        %v2221 = vld [vmem:[#allocation7 + $0x4] ss:$0 sm:$0xff]
        %v2222 = vshrl.u32 %v2206, 16
        %v2224 = vshll.u32 %v2206, 16
        %v2226 = vrot.slane %v2224, 1
        %v2227 = vor.u32 %v2222, %v2226
        %v2228 = vshll.u32 %v2208, 16
        %v2230 = vrot.slane %v2228, 1
        %v2231 = vsel %vm664, %v2227, %v2230
        %v2232 = vshrl.u32 %v2208, 16
        %v2234 = vor.u32 %v2232, %v2230
        %v2235 = vshll.u32 %v2210, 16
        %v2237 = vrot.slane %v2235, 1
        %v2238 = vsel %vm664, %v2234, %v2237
        %v2239 = vshrl.u32 %v2210, 16
        %v2241 = vor.u32 %v2239, %v2237
        %v2242 = vshll.u32 %v2212, 16
        %v2244 = vrot.slane %v2242, 1
        %v2245 = vsel %vm664, %v2241, %v2244
        %v2246 = vshrl.u32 %v2212, 16
        %v2248 = vor.u32 %v2246, %v2244
        %v2249 = vshll.u32 %v2214, 16
        %v2251 = vrot.slane %v2249, 1
        %v2252 = vsel %vm664, %v2248, %v2251
        %v2259 = vunpack.c.l.b16 %v2215
        %v2260 = vunpack.c.l.b16 %v2216
        %v2261 = vunpack.c.l.b16 %v2217
        %v2262 = vunpack.c.l.b16 %v2218
        %v2263 = vunpack.c.l.b16 %v2219
        %v2264 = vunpack.c.l.b16 %v2220
        %v2265 = vpack.c.b16 %v2260, %v2259
        %v2266 = vpack.c.b16 %v2262, %v2261
        %v2267 = vpack.c.b16 %v2264, %v2263
        %v2272 = vsel %vm791, %v2231, 0
        %v2275 = vsel %vm791, %v2238, 0
        %v2278 = vsel %vm791, %v2245, 0
        %v2281 = vsel %vm791, %v2252, 0
        %2283 = vmatpush.bf16.msra.mxu0 0
        %2284 = vmatpush.bf16.msra.mxu0 0
        %2285 = vmatpush.bf16.msra.mxu0 0
        %2286 = vmatpush.bf16.msra.mxu0 0
        %2287 = vmatpush.bf16.msra.mxu0 0
        %2288 = vmatpush.bf16.msra.mxu0 %v2267
        %2289 = vmatpush.bf16.msra.mxu0 %v2266
        %2290 = vmatpush.bf16.msra.mxu0 %v2265
        %2291 = vmatmul.bf16.gmra.mxu0 %v2272
        %v2292 = vpop.f32.mrf.mxu0
        %v2293 = vadd.f32 %v2221, %v2292
        %v2294 = vpop.f32.mrf.mxu0
        %v2295 = vadd.f32 %v2221, %v2294
        %2296 = vmatmul.bf16.gmra.mxu0 %v2275
        %v2297 = vpop.f32.mrf.mxu0
        %v2298 = vadd.f32 %v2221, %v2297
        %v2299 = vpop.f32.mrf.mxu0
        %v2300 = vadd.f32 %v2221, %v2299
        %2301 = vmatmul.bf16.gmra.mxu0 %v2278
        %v2302 = vpop.f32.mrf.mxu0
        %v2303 = vadd.f32 %v2221, %v2302
        %v2304 = vpop.f32.mrf.mxu0
        %v2305 = vadd.f32 %v2221, %v2304
        %2306 = vmatmul.bf16.gmra.mxu0 %v2281
        %v2307 = vpop.f32.mrf.mxu0
        %v2308 = vadd.f32 %v2221, %v2307
        %v2309 = vpop.f32.mrf.mxu0
        %v2310 = vadd.f32 %v2221, %v2309
        %2311 = vdwg.mxu0
        %v2312 = vmax.f32 %v2293, 0.0
        %v2313 = vmax.f32 %v2295, 0.0
        %v2314 = vmax.f32 %v2298, 0.0
        %v2315 = vmax.f32 %v2300, 0.0
        %v2316 = vmax.f32 %v2303, 0.0
        %v2317 = vmax.f32 %v2305, 0.0
        %v2318 = vmax.f32 %v2308, 0.0
        %v2319 = vmax.f32 %v2310, 0.0
        %2328 = vrot.lane.b32.xlu0 %v1018, 64
        %v2329 = vpop.permute.xlu0 %2328
        %2330 = vrot.lane.b32.xlu0 %v1019, 64
        %v2331 = vpop.permute.xlu0 %2330
        %2332 = vrot.lane.b32.xlu0 %v1020, 64
        %v2333 = vpop.permute.xlu0 %2332
        %2334 = vrot.lane.b32.xlu0 %v1021, 64
        %v2335 = vpop.permute.xlu0 %2334
        %2336 = vrot.lane.b32.xlu0 %v1022, 64
        %v2337 = vpop.permute.xlu0 %2336
        %2338 = vrot.lane.b32.xlu0 %v1023, 64
        %v2339 = vpop.permute.xlu0 %2338
        %2340 = vrot.lane.b32.xlu0 %v1024, 64
        %v2341 = vpop.permute.xlu0 %2340
        %2342 = vrot.lane.b32.xlu0 %v1025, 64
        %v2343 = vpop.permute.xlu0 %2342
        %2360 = vrot.lane.b32.xlu0 %v2312, 96
        %v2361 = vpop.permute.xlu0 %2360
        %2362 = vrot.lane.b32.xlu0 %v2313, 96
        %v2363 = vpop.permute.xlu0 %2362
        %2364 = vrot.lane.b32.xlu0 %v2314, 96
        %v2365 = vpop.permute.xlu0 %2364
        %2366 = vrot.lane.b32.xlu0 %v2315, 96
        %v2367 = vpop.permute.xlu0 %2366
        %2368 = vrot.lane.b32.xlu0 %v2316, 96
        %v2369 = vpop.permute.xlu0 %2368
        %2370 = vrot.lane.b32.xlu0 %v2317, 96
        %v2371 = vpop.permute.xlu0 %2370
        %2372 = vrot.lane.b32.xlu0 %v2318, 96
        %v2373 = vpop.permute.xlu0 %2372
        %2374 = vrot.lane.b32.xlu0 %v2319, 96
        %v2375 = vpop.permute.xlu0 %2374
        %v2384 = vsel %vm821, %v441, %v2329
        %v2385 = vsel %vm821, %v443, %v2331
        %v2386 = vsel %vm821, %v445, %v2333
        %v2387 = vsel %vm821, %v447, %v2335
        %v2388 = vsel %vm821, %v449, %v2337
        %v2389 = vsel %vm821, %v451, %v2339
        %v2390 = vsel %vm821, %v453, %v2341
        %v2391 = vsel %vm821, %v455, %v2343
        %v2392 = vsel %vm800, %v1908, %v2361
        %v2393 = vsel %vm800, %v1909, %v2363
        %v2394 = vsel %vm800, %v1910, %v2365
        %v2395 = vsel %vm800, %v1911, %v2367
        %v2396 = vsel %vm800, %v1912, %v2369
        %v2397 = vsel %vm800, %v1913, %v2371
        %v2398 = vsel %vm800, %v1914, %v2373
        %v2399 = vsel %vm800, %v1915, %v2375
        %v2400 = vpack.c.bf16 %v2392, %v2384
        %v2401 = vpack.c.bf16 %v2393, %v2385
        %v2402 = vpack.c.bf16 %v2394, %v2386
        %v2403 = vpack.c.bf16 %v2395, %v2387
        %v2404 = vpack.c.bf16 %v2396, %v2388
        %v2405 = vpack.c.bf16 %v2397, %v2389
        %v2406 = vpack.c.bf16 %v2398, %v2390
        %v2407 = vpack.c.bf16 %v2399, %v2391
        %2408 = vst [vmem:[%s303] sm:$0xff] %v2400
        %2409 = vst [vmem:[%s303 + $0x8] sm:$0xff] %v2401
        %2410 = vst [vmem:[%s303 + $0x10] sm:$0xff] %v2402
        %2411 = vst [vmem:[%s303 + $0x18] sm:$0xff] %v2403
        %2412 = vst [vmem:[%s303 + $0x20] sm:$0xff] %v2404
        %2413 = vst [vmem:[%s303 + $0x28] sm:$0xff] %v2405
        %2414 = vst [vmem:[%s303 + $0x30] sm:$0xff] %v2406
        %2415 = vst [vmem:[%s303 + $0x38] sm:$0xff] %v2407
        %s2416 = sand.u32 %s183, 1
        %s2417 = scalar_lea.sflag [#allocation6], %s2416
        %s2418 = sand.u32 %s183, 1
        %s2419 = smul.addr %s2418, 64
        %s2420 = scalar_lea.vmem [#allocation9], %s2419
        // Predicated region
        $region57: #{tpu_custom_call.1} parent=47 // pred_check
          %p2421 = pneg %p193
        $region58: #{tpu_custom_call.1} parent=47 // pred_check_branch
          %2423 = sbr.rel (%p2421) target = $region60
        $region59: #{tpu_custom_call.1} parent=47 // pred_region
          %2425 = vsyncadd %s2417, 0
          %s2426 = smul.addr %s23, 16
          %s2427 = smul.addr %s2426, 4
          %s2428 = scalar_lea.hbm %s7, %s2427
          %s2429 = sshll.u32 %s2420, 4
          %s2430 = int_to_ptr.vmem [resolvable:$true] %s2429
          %s2431 = sshll.u32 %s2428, 4
          %s2432 = int_to_ptr.hbm [resolvable:$true] %s2431
          %2437 = dma.vmem_to_hbm [thread:$0]  %s2430, 1024, %s2432, %s2417, 128, 128, 8
        $region60: #{tpu_custom_call.1} parent=47 // pred_fallthru
          _
      $region48: #{tpu_custom_call.1} parent=5 // pred_fallthru
        _
      %p2438 = scmp.le.s32.totalorder 2, %s18
      // Predicated region
      $region61: #{tpu_custom_call.1} parent=5 // pred_check
        %p2439 = pneg %p2438
      $region62: #{tpu_custom_call.1} parent=5 // pred_check_branch
        %2441 = sbr.rel (%p2439) target = $region64
      $region63: #{tpu_custom_call.1} parent=5 // pred_region
        %s2442 = ssub.s32 %s18, 2
        // Predicated region
        $region65: #{tpu_custom_call.1} parent=63 // pred_check
          %p2443 = pneg %p199
        $region66: #{tpu_custom_call.1} parent=63 // pred_check_branch
          %2445 = sbr.rel (%p2443) target = $region68
        $region67: #{tpu_custom_call.1} parent=63 // pred_region
          %s2446 = sand.u32 %s184, 1
          %s2447 = scalar_lea.sflag [#allocation6], %s2446
          %s2448 = sand.u32 %s184, 1
          %s2449 = smul.addr %s2448, 64
          %s2450 = scalar_lea.vmem [#allocation9], %s2449
          %2452 = dma.done %s2447, 1024
        $region68: #{tpu_custom_call.1} parent=63 // pred_fallthru
          _
      $region64: #{tpu_custom_call.1} parent=5 // pred_fallthru
        _
    $region6: #{tpu_custom_call.1} parent=1 // loop_footer
      %s22 = sadd.s32 1, %s18
    $region7: #{tpu_custom_call.1} parent=1 // loop_footer_branch
      %17 = sbr.rel target = $region3
    $region8: #{tpu_custom_call.1} parent=1 // loop_exit
      _
    %2453 = vsyncpa [#allocation5], 1
    %s2454 = scalar_lea.sflag [#allocation5], 1
    %2455 = vsyncpa %s2454, 1
    %2456 = vsyncpa [#allocation8], 1
    %2457 = vsyncpa [#allocation6], 1
    %s2458 = scalar_lea.sflag [#allocation6], 1
    %2459 = vsyncpa %s2458, 1

</llo_original>
